<compile_context>
chip_gen: v5e
topology: v5e:2x2
jax: 0.10.0
libtpu: 0.0.40
codegen_flags: <defaults>
</compile_context>

<pallas_src>
import jax
import jax.numpy as jnp
from jax import lax
from jax.experimental import pallas as pl
from jax.experimental.pallas import tpu as pltpu


# ----------------------------------------------------------------------------
# helpers
# ----------------------------------------------------------------------------

def _round_up(x, m):
    return ((x + m - 1) // m) * m


def _mxu_lane_width():
    """256 on v6e/v7x (2x256x256 MXUs), 128 otherwise (v5e: 4x128x128)."""
    try:
        kind = jax.devices()[0].device_kind.lower()
    except Exception:
        return 128
    return 256 if ("v6" in kind or "v7" in kind) else 128


def _lane_round(d, mxu):
    # Feed the full 256-wide MXU only when the extra zero-pad FLOPs are modest
    # (review: apply for d >= 512).  128 is always lane-dense.
    if mxu >= 256 and d >= 512:
        return _round_up(d, 256)
    return _round_up(d, 128)


def _choose_batch_tiling(B, tile_m=None):
    """Pick (tile_m, padded_B).  Guarantees >= 2 (even #) grid steps so both
    v7x TensorCores get work and x/out DMAs overlap compute; tiles <= 512 rows."""
    B8 = _round_up(max(B, 1), 8)
    if tile_m is not None:
        tile_m = _round_up(tile_m, 8)
        return tile_m, _round_up(B8, tile_m)
    n_steps = max(2, -(-B8 // 512))
    if n_steps % 2:
        n_steps += 1
    tile_m = _round_up(-(-B8 // n_steps), 8)
    return tile_m, tile_m * n_steps


# ----------------------------------------------------------------------------
# kernels
# ----------------------------------------------------------------------------

def _dnn_kernel_resident(x_ref, w_in_ref, b_in_ref, w_mid_ref, b_mid_ref,
                         w_out_ref, b_out_ref, o_ref):
    """All weights VMEM-resident; batch-tiled grid axis only."""
    f32 = jnp.float32

    # in_layer: x @ W_in + b_in (no activation)
    h = jnp.dot(x_ref[...], w_in_ref[...], preferred_element_type=f32)
    h = h + b_in_ref[...]

    # mid layers: visible fori_loop keeps exactly one live h tile.
    n_layers = w_mid_ref.shape[0]

    def body(i, h):
        hi = jnp.dot(h.astype(w_mid_ref.dtype), w_mid_ref[i],
                     preferred_element_type=f32)
        return jnp.maximum(hi + b_mid_ref[i], 0.0)

    h = lax.fori_loop(0, n_layers, body, h, unroll=(n_layers <= 4))

    # out_layer: h @ W_out + b_out (no activation)
    y = jnp.dot(h.astype(w_out_ref.dtype), w_out_ref[...],
                preferred_element_type=f32) + b_out_ref[...]
    o_ref[...] = y.astype(o_ref.dtype)


def _dnn_kernel_streamed(x_ref, w_in_ref, b_in_ref, w_mid_ref, b_mid_ref,
                         w_out_ref, b_out_ref, o_ref, h_ref):
    """W_mid streamed one layer per grid step (second, 'arbitrary' grid axis);
    only W_in / W_out / biases stay resident.  h lives in a VMEM scratch."""
    f32 = jnp.float32
    l = pl.program_id(1)

    @pl.when(l == 0)
    def _():
        h0 = jnp.dot(x_ref[...], w_in_ref[...], preferred_element_type=f32)
        h_ref[...] = h0 + b_in_ref[...]

    # current mid layer (double-buffered by the pipeline)
    h = jnp.dot(h_ref[...].astype(w_mid_ref.dtype), w_mid_ref[0],
                preferred_element_type=f32)
    h_ref[...] = jnp.maximum(h + b_mid_ref[0], 0.0)

    @pl.when(l == pl.num_programs(1) - 1)
    def _():
        y = jnp.dot(h_ref[...].astype(w_out_ref.dtype), w_out_ref[...],
                    preferred_element_type=f32) + b_out_ref[...]
        o_ref[...] = y.astype(o_ref.dtype)


# ----------------------------------------------------------------------------
# pallas_call builder
# ----------------------------------------------------------------------------

def _build_dnn_call(*, tile_m, B_p, in_p, hid_p, out_p, L, streamed,
                    single_buffer_resident):
    grid_rank = 2 if streamed else 1

    def resident(shape):
        zeros = (0,) * len(shape)
        idx = (lambda m: zeros) if grid_rank == 1 else (lambda m, l: zeros)
        kwargs = {}
        if single_buffer_resident:
            # index_map never changes -> no need for the default double buffer.
            kwargs["pipeline_mode"] = pl.Buffered(1)
        return pl.BlockSpec(shape, idx, **kwargs)

    if streamed:
        grid = (B_p // tile_m, L)
        in_specs = [
            # x: same block across the layer axis -> re-DMA is skipped.
            pl.BlockSpec((tile_m, in_p), lambda m, l: (m, 0)),
            resident((in_p, hid_p)),                                  # W_in
            resident((1, hid_p)),                                     # b_in
            pl.BlockSpec((1, hid_p, hid_p), lambda m, l: (l, 0, 0)),  # W_mid[l]
            pl.BlockSpec((1, 1, hid_p), lambda m, l: (l, 0, 0)),      # b_mid[l]
            resident((hid_p, out_p)),                                 # W_out
            resident((1, out_p)),                                     # b_out
        ]
        out_specs = pl.BlockSpec((tile_m, out_p), lambda m, l: (m, 0))
        scratch = [pltpu.VMEM((tile_m, hid_p), jnp.float32)]          # h
        kernel = _dnn_kernel_streamed
        semantics = ("parallel", "arbitrary")
    else:
        grid = (B_p // tile_m,)
        in_specs = [
            pl.BlockSpec((tile_m, in_p), lambda m: (m, 0)),           # x
            resident((in_p, hid_p)),                                  # W_in
            resident((1, hid_p)),                                     # b_in
            resident((L, hid_p, hid_p)),                              # W_mid stack
            resident((L, 1, hid_p)),                                  # b_mid stack
            resident((hid_p, out_p)),                                 # W_out
            resident((1, out_p)),                                     # b_out
        ]
        out_specs = pl.BlockSpec((tile_m, out_p), lambda m: (m, 0))
        scratch = []
        kernel = _dnn_kernel_resident
        semantics = ("parallel",)

    # --- VMEM budget (review item: set vmem_limit_bytes explicitly) ---------
    bf, f4 = 2, 4
    wbuf = 1 if single_buffer_resident else 2
    resident_bytes = wbuf * (in_p * hid_p * bf + hid_p * f4
                             + hid_p * out_p * bf + out_p * f4)
    if streamed:
        mid_bytes = 2 * (hid_p * hid_p * bf + hid_p * f4)   # 2 in-flight layers
        scratch_bytes = tile_m * hid_p * f4
    else:
        mid_bytes = wbuf * L * (hid_p * hid_p * bf + hid_p * f4)
        scratch_bytes = 0
    io_bytes = 2 * tile_m * in_p * bf + 2 * tile_m * out_p * f4
    temp_bytes = 3 * tile_m * hid_p * f4                     # h temporaries/casts
    need = resident_bytes + mid_bytes + scratch_bytes + io_bytes + temp_bytes
    vmem_limit = int(min(max(int(need * 1.25), 32 << 20), 100 << 20))

    # --- cost estimate (advisory, helps XLA schedule around the call) -------
    flops = 2 * B_p * (in_p * hid_p + L * hid_p * hid_p + hid_p * out_p)
    bytes_accessed = (B_p * in_p * bf + B_p * out_p * f4
                      + in_p * hid_p * bf + L * hid_p * hid_p * bf
                      + hid_p * out_p * bf
                      + (hid_p + L * hid_p + out_p) * f4)
    cost = pl.CostEstimate(flops=flops, transcendentals=0,
                           bytes_accessed=bytes_accessed)

    return pl.pallas_call(
        kernel,
        out_shape=jax.ShapeDtypeStruct((B_p, out_p), jnp.float32),
        grid_spec=pltpu.PrefetchScalarGridSpec(
            num_scalar_prefetch=0,
            grid=grid,
            in_specs=in_specs,
            out_specs=out_specs,
            scratch_shapes=scratch),
        compiler_params=pltpu.CompilerParams(
            dimension_semantics=semantics,
            vmem_limit_bytes=vmem_limit),
        cost_estimate=cost,
    )


# ----------------------------------------------------------------------------
# user-facing API
# ----------------------------------------------------------------------------

def prepare_params(params, *, lane_pref=None):
    """ONE-TIME preparation: pad feature dims to lane-dense multiples and cast
    matmul operands to bf16 (biases stay f32).  Hoisted out of the per-call
    path so each forward does not pay a full HBM sweep over the weights."""
    w_in, b_in = params["w_in"], params["b_in"]       # (in, H), (1, H)
    w_mid, b_mid = params["w_mid"], params["b_mid"]   # (L, H, H), (L, 1, H)
    w_out, b_out = params["w_out"], params["b_out"]   # (H, O), (1, O)

    in_dim, H = w_in.shape
    O = w_out.shape[1]
    L = w_mid.shape[0]

    mxu = lane_pref if lane_pref is not None else _mxu_lane_width()
    in_p = _lane_round(in_dim, mxu)
    hid_p = _lane_round(H, mxu)
    out_p = _lane_round(O, mxu)

    bf16, f32 = jnp.bfloat16, jnp.float32
    return {
        "w_in": jnp.pad(w_in, ((0, in_p - in_dim), (0, hid_p - H))).astype(bf16),
        "b_in": jnp.pad(b_in, ((0, 0), (0, hid_p - H))).astype(f32),
        "w_mid": jnp.pad(w_mid, ((0, 0), (0, hid_p - H), (0, hid_p - H))).astype(bf16),
        "b_mid": jnp.pad(b_mid, ((0, 0), (0, 0), (0, hid_p - H))).astype(f32),
        "w_out": jnp.pad(w_out, ((0, hid_p - H), (0, out_p - O))).astype(bf16),
        "b_out": jnp.pad(b_out, ((0, 0), (0, out_p - O))).astype(f32),
        "dims": (in_dim, H, O, L),
        "padded": (in_p, hid_p, out_p),
    }


def dnn_forward(x, prepped, *, tile_m=None, stream_layers=None):
    """x: [B, in_dim] float32.  prepped: output of prepare_params()."""
    in_dim, H, O, L = prepped["dims"]
    in_p, hid_p, out_p = prepped["padded"]

    B = x.shape[0]
    tile_m, B_p = _choose_batch_tiling(B, tile_m)

    if stream_layers is None:
        # v7x has only 64 MiB VMEM per TensorCore (and the stack is duplicated
        # into both cores under "parallel"); do not pin a large W_mid stack.
        stream_layers = (L * hid_p * hid_p * 2) > (20 << 20)

    # x: pad batch/feature dims and cast to bf16 in one expression (weights are
    # already prepared once; only this small per-call pass remains).
    xp = jnp.pad(x, ((0, B_p - B), (0, in_p - in_dim))).astype(jnp.bfloat16)

    args = (xp, prepped["w_in"], prepped["b_in"], prepped["w_mid"],
            prepped["b_mid"], prepped["w_out"], prepped["b_out"])

    try:
        call = _build_dnn_call(tile_m=tile_m, B_p=B_p, in_p=in_p, hid_p=hid_p,
                               out_p=out_p, L=L, streamed=stream_layers,
                               single_buffer_resident=True)
        out = call(*args)
    except Exception:
        # Fallback for jax builds without BlockSpec(pipeline_mode=pl.Buffered(1)).
        call = _build_dnn_call(tile_m=tile_m, B_p=B_p, in_p=in_p, hid_p=hid_p,
                               out_p=out_p, L=L, streamed=stream_layers,
                               single_buffer_resident=False)
        out = call(*args)

    return out[:B, :O]


# ----------------------------------------------------------------------------
# init + pure-JAX reference
# ----------------------------------------------------------------------------

def init_params(key, in_dim, hid_dim, out_dim, n_layers):
    """PyTorch nn.Linear-style init (uniform +/- 1/sqrt(fan_in)); weights stored
    pre-transposed as (fan_in, fan_out) so the kernel does plain x @ W + b."""
    ks = jax.random.split(key, 2 * (n_layers + 2))

    def linear(kw, kb, fan_in, fan_out):
        bound = float(1.0 / (fan_in ** 0.5))
        w = jax.random.uniform(kw, (fan_in, fan_out), jnp.float32, -bound, bound)
        b = jax.random.uniform(kb, (1, fan_out), jnp.float32, -bound, bound)
        return w, b

    w_in, b_in = linear(ks[0], ks[1], in_dim, hid_dim)
    w_mids, b_mids = [], []
    for i in range(n_layers):
        w, b = linear(ks[2 + 2 * i], ks[3 + 2 * i], hid_dim, hid_dim)
        w_mids.append(w)
        b_mids.append(b)
    w_out, b_out = linear(ks[2 + 2 * n_layers], ks[3 + 2 * n_layers],
                          hid_dim, out_dim)
    return {"w_in": w_in, "b_in": b_in,
            "w_mid": jnp.stack(w_mids), "b_mid": jnp.stack(b_mids),
            "w_out": w_out, "b_out": b_out}


def reference_forward(x, p):
    """Pure-JAX reference with the same bf16-operand / f32-accumulate policy."""
    bf16, f32 = jnp.bfloat16, jnp.float32
    h = jnp.dot(x.astype(bf16), p["w_in"].astype(bf16),
                preferred_element_type=f32) + p["b_in"]
    for i in range(p["w_mid"].shape[0]):
        h = jnp.dot(h.astype(bf16), p["w_mid"][i].astype(bf16),
                    preferred_element_type=f32) + p["b_mid"][i]
        h = jnp.maximum(h, 0.0)
    return jnp.dot(h.astype(bf16), p["w_out"].astype(bf16),
                   preferred_element_type=f32) + p["b_out"]


if __name__ == "__main__":
    key = jax.random.PRNGKey(0)
    k_x, k_p = jax.random.split(key)

    B, in_dim, hid_dim, out_dim, n_layers = 8, 32, 64, 16, 3
    x = jax.random.normal(k_x, (B, in_dim), jnp.float32)
    params = init_params(k_p, in_dim, hid_dim, out_dim, n_layers)
    prepped = prepare_params(params)   # one-time pad + bf16 cast of weights

    ref = reference_forward(x, params)

    # default path: whole W_mid stack pinned in VMEM, single-buffered
    out_resident = jax.block_until_ready(dnn_forward(x, prepped))
    # large-model (v7x) path: W_mid streamed layer-by-layer over a grid axis
    out_streamed = jax.block_until_ready(
        dnn_forward(x, prepped, stream_layers=True))

    assert out_resident.shape == (B, out_dim)
    assert out_streamed.shape == (B, out_dim)
    assert jnp.allclose(out_resident, ref, atol=1e-2, rtol=1e-2), \
        float(jnp.max(jnp.abs(out_resident - ref)))
    assert jnp.allclose(out_streamed, ref, atol=1e-2, rtol=1e-2), \
        float(jnp.max(jnp.abs(out_streamed - ref)))

    print("KERNEL_OK")
</pallas_src>

<mosaic_0001>
module attributes {stable_mosaic.version = 11 : i64} {
  func.func @_dnn_kernel_resident(%arg0: i32, %arg1: memref<8x128xbf16, #tpu.memory_space<vmem>>, %arg2: memref<128x128xbf16, #tpu.memory_space<vmem>>, %arg3: memref<1x128xf32, #tpu.memory_space<vmem>>, %arg4: memref<3x128x128xbf16, #tpu.memory_space<vmem>>, %arg5: memref<3x1x128xf32, #tpu.memory_space<vmem>>, %arg6: memref<128x128xbf16, #tpu.memory_space<vmem>>, %arg7: memref<1x128xf32, #tpu.memory_space<vmem>>, %arg8: memref<8x128xf32, #tpu.memory_space<vmem>>) attributes {dimension_semantics = [#tpu.dimension_semantics<parallel>], iteration_bounds = array<i64: 2>, scalar_prefetch = 0 : i64, scratch_operands = 0 : i64, tpu.core_type = #tpu.core_type<tc>, window_params = [{transform_indices = @transform_0, window_bounds = array<i64: 8, 128>}, {pipeline_mode = #tpu.pipeline_mode<synchronous>, transform_indices = @transform_1, window_bounds = array<i64: 128, 128>}, {pipeline_mode = #tpu.pipeline_mode<synchronous>, transform_indices = @transform_2, window_bounds = array<i64: 1, 128>}, {pipeline_mode = #tpu.pipeline_mode<synchronous>, transform_indices = @transform_3, window_bounds = array<i64: 3, 128, 128>}, {pipeline_mode = #tpu.pipeline_mode<synchronous>, transform_indices = @transform_4, window_bounds = array<i64: 3, 1, 128>}, {pipeline_mode = #tpu.pipeline_mode<synchronous>, transform_indices = @transform_5, window_bounds = array<i64: 128, 128>}, {pipeline_mode = #tpu.pipeline_mode<synchronous>, transform_indices = @transform_6, window_bounds = array<i64: 1, 128>}, {transform_indices = @transform_7, window_bounds = array<i64: 8, 128>}]} {
    %c0 = arith.constant 0 : index
    %c0_0 = arith.constant 0 : index
    %0 = vector.load %arg1[%c0, %c0_0] : memref<8x128xbf16, #tpu.memory_space<vmem>>, vector<8x128xbf16>
    %c0_1 = arith.constant 0 : index
    %c0_2 = arith.constant 0 : index
    %1 = vector.load %arg2[%c0_1, %c0_2] : memref<128x128xbf16, #tpu.memory_space<vmem>>, vector<128x128xbf16>
    %cst = arith.constant dense<0.000000e+00> : vector<8x128xf32>
    %2 = tpu.matmul %0, %1, %cst {dimension_numbers = #tpu.dot_dimension_numbers<[1], [0], [0], [1], [0, 0, 1, 1], [], []>} : vector<8x128xbf16>, vector<128x128xbf16>, vector<8x128xf32> -> vector<8x128xf32>
    %c0_3 = arith.constant 0 : index
    %c0_4 = arith.constant 0 : index
    %3 = vector.load %arg3[%c0_3, %c0_4] : memref<1x128xf32, #tpu.memory_space<vmem>>, vector<1x128xf32>
    %4 = vector.broadcast %3 : vector<1x128xf32> to vector<8x128xf32>
    %5 = arith.addf %2, %4 : vector<8x128xf32>
    %c0_i32 = arith.constant 0 : i32
    %6 = arith.truncf %5 : vector<8x128xf32> to vector<8x128xbf16>
    %7 = arith.index_cast %c0_i32 : i32 to index
    %c0_5 = arith.constant 0 : index
    %c0_6 = arith.constant 0 : index
    %8 = vector.load %arg4[%7, %c0_5, %c0_6] : memref<3x128x128xbf16, #tpu.memory_space<vmem>>, vector<1x128x128xbf16>
    %9 = vector.shape_cast %8 : vector<1x128x128xbf16> to vector<128x128xbf16>
    %cst_7 = arith.constant dense<0.000000e+00> : vector<8x128xf32>
    %10 = tpu.matmul %6, %9, %cst_7 {dimension_numbers = #tpu.dot_dimension_numbers<[1], [0], [0], [1], [0, 0, 1, 1], [], []>} : vector<8x128xbf16>, vector<128x128xbf16>, vector<8x128xf32> -> vector<8x128xf32>
    %11 = arith.index_cast %c0_i32 : i32 to index
    %c0_8 = arith.constant 0 : index
    %c0_9 = arith.constant 0 : index
    %12 = vector.load %arg5[%11, %c0_8, %c0_9] : memref<3x1x128xf32, #tpu.memory_space<vmem>>, vector<1x1x128xf32>
    %13 = vector.shape_cast %12 : vector<1x1x128xf32> to vector<1x128xf32>
    %14 = vector.broadcast %13 : vector<1x128xf32> to vector<8x128xf32>
    %15 = arith.addf %10, %14 : vector<8x128xf32>
    %cst_10 = arith.constant 0.000000e+00 : f32
    %16 = vector.broadcast %cst_10 : f32 to vector<8x128xf32>
    %17 = arith.maximumf %15, %16 : vector<8x128xf32>
    %c1_i32 = arith.constant 1 : i32
    %18 = arith.truncf %17 : vector<8x128xf32> to vector<8x128xbf16>
    %19 = arith.index_cast %c1_i32 : i32 to index
    %c0_11 = arith.constant 0 : index
    %c0_12 = arith.constant 0 : index
    %20 = vector.load %arg4[%19, %c0_11, %c0_12] : memref<3x128x128xbf16, #tpu.memory_space<vmem>>, vector<1x128x128xbf16>
    %21 = vector.shape_cast %20 : vector<1x128x128xbf16> to vector<128x128xbf16>
    %cst_13 = arith.constant dense<0.000000e+00> : vector<8x128xf32>
    %22 = tpu.matmul %18, %21, %cst_13 {dimension_numbers = #tpu.dot_dimension_numbers<[1], [0], [0], [1], [0, 0, 1, 1], [], []>} : vector<8x128xbf16>, vector<128x128xbf16>, vector<8x128xf32> -> vector<8x128xf32>
    %23 = arith.index_cast %c1_i32 : i32 to index
    %c0_14 = arith.constant 0 : index
    %c0_15 = arith.constant 0 : index
    %24 = vector.load %arg5[%23, %c0_14, %c0_15] : memref<3x1x128xf32, #tpu.memory_space<vmem>>, vector<1x1x128xf32>
    %25 = vector.shape_cast %24 : vector<1x1x128xf32> to vector<1x128xf32>
    %26 = vector.broadcast %25 : vector<1x128xf32> to vector<8x128xf32>
    %27 = arith.addf %22, %26 : vector<8x128xf32>
    %cst_16 = arith.constant 0.000000e+00 : f32
    %28 = vector.broadcast %cst_16 : f32 to vector<8x128xf32>
    %29 = arith.maximumf %27, %28 : vector<8x128xf32>
    %c2_i32 = arith.constant 2 : i32
    %30 = arith.truncf %29 : vector<8x128xf32> to vector<8x128xbf16>
    %31 = arith.index_cast %c2_i32 : i32 to index
    %c0_17 = arith.constant 0 : index
    %c0_18 = arith.constant 0 : index
    %32 = vector.load %arg4[%31, %c0_17, %c0_18] : memref<3x128x128xbf16, #tpu.memory_space<vmem>>, vector<1x128x128xbf16>
    %33 = vector.shape_cast %32 : vector<1x128x128xbf16> to vector<128x128xbf16>
    %cst_19 = arith.constant dense<0.000000e+00> : vector<8x128xf32>
    %34 = tpu.matmul %30, %33, %cst_19 {dimension_numbers = #tpu.dot_dimension_numbers<[1], [0], [0], [1], [0, 0, 1, 1], [], []>} : vector<8x128xbf16>, vector<128x128xbf16>, vector<8x128xf32> -> vector<8x128xf32>
    %35 = arith.index_cast %c2_i32 : i32 to index
    %c0_20 = arith.constant 0 : index
    %c0_21 = arith.constant 0 : index
    %36 = vector.load %arg5[%35, %c0_20, %c0_21] : memref<3x1x128xf32, #tpu.memory_space<vmem>>, vector<1x1x128xf32>
    %37 = vector.shape_cast %36 : vector<1x1x128xf32> to vector<1x128xf32>
    %38 = vector.broadcast %37 : vector<1x128xf32> to vector<8x128xf32>
    %39 = arith.addf %34, %38 : vector<8x128xf32>
    %cst_22 = arith.constant 0.000000e+00 : f32
    %40 = vector.broadcast %cst_22 : f32 to vector<8x128xf32>
    %41 = arith.maximumf %39, %40 : vector<8x128xf32>
    %c3_i32 = arith.constant 3 : i32
    %42 = arith.truncf %41 : vector<8x128xf32> to vector<8x128xbf16>
    %c0_23 = arith.constant 0 : index
    %c0_24 = arith.constant 0 : index
    %43 = vector.load %arg6[%c0_23, %c0_24] : memref<128x128xbf16, #tpu.memory_space<vmem>>, vector<128x128xbf16>
    %cst_25 = arith.constant dense<0.000000e+00> : vector<8x128xf32>
    %44 = tpu.matmul %42, %43, %cst_25 {dimension_numbers = #tpu.dot_dimension_numbers<[1], [0], [0], [1], [0, 0, 1, 1], [], []>} : vector<8x128xbf16>, vector<128x128xbf16>, vector<8x128xf32> -> vector<8x128xf32>
    %c0_26 = arith.constant 0 : index
    %c0_27 = arith.constant 0 : index
    %45 = vector.load %arg7[%c0_26, %c0_27] : memref<1x128xf32, #tpu.memory_space<vmem>>, vector<1x128xf32>
    %46 = vector.broadcast %45 : vector<1x128xf32> to vector<8x128xf32>
    %47 = arith.addf %44, %46 : vector<8x128xf32>
    %c0_28 = arith.constant 0 : index
    %c0_29 = arith.constant 0 : index
    %48 = vector.load %arg8[%c0_28, %c0_29] : memref<8x128xf32, #tpu.memory_space<vmem>>, vector<8x128xf32>
    tpu.vector_store %arg8[%c0_28, %c0_29], %47 {strides = array<i32>} : memref<8x128xf32, #tpu.memory_space<vmem>>, vector<8x128xf32>,
    return
  }
  func.func @transform_0(%arg0: i32) -> (i32, i32) {
    %c0_i32 = arith.constant 0 : i32
    %c0_i32_0 = arith.constant 0 : i32
    return %arg0, %c0_i32 : i32, i32
  }
  func.func @transform_1(%arg0: i32) -> (i32, i32) {
    %c0_i32 = arith.constant 0 : i32
    %c0_i32_0 = arith.constant 0 : i32
    %c0_i32_1 = arith.constant 0 : i32
    return %c0_i32, %c0_i32_0 : i32, i32
  }
  func.func @transform_2(%arg0: i32) -> (i32, i32) {
    %c0_i32 = arith.constant 0 : i32
    %c0_i32_0 = arith.constant 0 : i32
    %c0_i32_1 = arith.constant 0 : i32
    return %c0_i32, %c0_i32_0 : i32, i32
  }
  func.func @transform_3(%arg0: i32) -> (i32, i32, i32) {
    %c0_i32 = arith.constant 0 : i32
    %c0_i32_0 = arith.constant 0 : i32
    %c0_i32_1 = arith.constant 0 : i32
    %c0_i32_2 = arith.constant 0 : i32
    return %c0_i32, %c0_i32_0, %c0_i32_1 : i32, i32, i32
  }
  func.func @transform_4(%arg0: i32) -> (i32, i32, i32) {
    %c0_i32 = arith.constant 0 : i32
    %c0_i32_0 = arith.constant 0 : i32
    %c0_i32_1 = arith.constant 0 : i32
    %c0_i32_2 = arith.constant 0 : i32
    return %c0_i32, %c0_i32_0, %c0_i32_1 : i32, i32, i32
  }
  func.func @transform_5(%arg0: i32) -> (i32, i32) {
    %c0_i32 = arith.constant 0 : i32
    %c0_i32_0 = arith.constant 0 : i32
    %c0_i32_1 = arith.constant 0 : i32
    return %c0_i32, %c0_i32_0 : i32, i32
  }
  func.func @transform_6(%arg0: i32) -> (i32, i32) {
    %c0_i32 = arith.constant 0 : i32
    %c0_i32_0 = arith.constant 0 : i32
    %c0_i32_1 = arith.constant 0 : i32
    return %c0_i32, %c0_i32_0 : i32, i32
  }
  func.func @transform_7(%arg0: i32) -> (i32, i32) {
    %c0_i32 = arith.constant 0 : i32
    %c0_i32_0 = arith.constant 0 : i32
    return %arg0, %c0_i32 : i32, i32
  }
}

module attributes {stable_mosaic.version = 11 : i64} {
  func.func @_dnn_kernel_resident(%arg0: i32, %arg1: memref<8x128xbf16, #tpu.memory_space<vmem>>, %arg2: memref<128x128xbf16, #tpu.memory_space<vmem>>, %arg3: memref<1x128xf32, #tpu.memory_space<vmem>>, %arg4: memref<3x128x128xbf16, #tpu.memory_space<vmem>>, %arg5: memref<3x1x128xf32, #tpu.memory_space<vmem>>, %arg6: memref<128x128xbf16, #tpu.memory_space<vmem>>, %arg7: memref<1x128xf32, #tpu.memory_space<vmem>>, %arg8: memref<8x128xf32, #tpu.memory_space<vmem>>) attributes {dimension_semantics = [#tpu.dimension_semantics<parallel>], iteration_bounds = array<i64: 2>, scalar_prefetch = 0 : i64, scratch_operands = 0 : i64, tpu.core_type = #tpu.core_type<tc>, window_params = [{transform_indices = @transform_0, window_bounds = array<i64: 8, 128>}, {pipeline_mode = #tpu.pipeline_mode<synchronous>, transform_indices = @transform_1, window_bounds = array<i64: 128, 128>}, {pipeline_mode = #tpu.pipeline_mode<synchronous>, transform_indices = @transform_2, window_bounds = array<i64: 1, 128>}, {pipeline_mode = #tpu.pipeline_mode<synchronous>, transform_indices = @transform_3, window_bounds = array<i64: 3, 128, 128>}, {pipeline_mode = #tpu.pipeline_mode<synchronous>, transform_indices = @transform_4, window_bounds = array<i64: 3, 1, 128>}, {pipeline_mode = #tpu.pipeline_mode<synchronous>, transform_indices = @transform_5, window_bounds = array<i64: 128, 128>}, {pipeline_mode = #tpu.pipeline_mode<synchronous>, transform_indices = @transform_6, window_bounds = array<i64: 1, 128>}, {transform_indices = @transform_7, window_bounds = array<i64: 8, 128>}]} {
    %c0 = arith.constant 0 : index
    %c0_0 = arith.constant 0 : index
    %0 = vector.load %arg1[%c0, %c0_0] : memref<8x128xbf16, #tpu.memory_space<vmem>>, vector<8x128xbf16>
    %c0_1 = arith.constant 0 : index
    %c0_2 = arith.constant 0 : index
    %1 = vector.load %arg2[%c0_1, %c0_2] : memref<128x128xbf16, #tpu.memory_space<vmem>>, vector<128x128xbf16>
    %cst = arith.constant dense<0.000000e+00> : vector<8x128xf32>
    %2 = tpu.matmul %0, %1, %cst {dimension_numbers = #tpu.dot_dimension_numbers<[1], [0], [0], [1], [0, 0, 1, 1], [], []>} : vector<8x128xbf16>, vector<128x128xbf16>, vector<8x128xf32> -> vector<8x128xf32>
    %c0_3 = arith.constant 0 : index
    %c0_4 = arith.constant 0 : index
    %3 = vector.load %arg3[%c0_3, %c0_4] : memref<1x128xf32, #tpu.memory_space<vmem>>, vector<1x128xf32>
    %4 = vector.broadcast %3 : vector<1x128xf32> to vector<8x128xf32>
    %5 = arith.addf %2, %4 : vector<8x128xf32>
    %c0_i32 = arith.constant 0 : i32
    %6 = arith.truncf %5 : vector<8x128xf32> to vector<8x128xbf16>
    %7 = arith.index_cast %c0_i32 : i32 to index
    %c0_5 = arith.constant 0 : index
    %c0_6 = arith.constant 0 : index
    %8 = vector.load %arg4[%7, %c0_5, %c0_6] : memref<3x128x128xbf16, #tpu.memory_space<vmem>>, vector<1x128x128xbf16>
    %9 = vector.shape_cast %8 : vector<1x128x128xbf16> to vector<128x128xbf16>
    %cst_7 = arith.constant dense<0.000000e+00> : vector<8x128xf32>
    %10 = tpu.matmul %6, %9, %cst_7 {dimension_numbers = #tpu.dot_dimension_numbers<[1], [0], [0], [1], [0, 0, 1, 1], [], []>} : vector<8x128xbf16>, vector<128x128xbf16>, vector<8x128xf32> -> vector<8x128xf32>
    %11 = arith.index_cast %c0_i32 : i32 to index
    %c0_8 = arith.constant 0 : index
    %c0_9 = arith.constant 0 : index
    %12 = vector.load %arg5[%11, %c0_8, %c0_9] : memref<3x1x128xf32, #tpu.memory_space<vmem>>, vector<1x1x128xf32>
    %13 = vector.shape_cast %12 : vector<1x1x128xf32> to vector<1x128xf32>
    %14 = vector.broadcast %13 : vector<1x128xf32> to vector<8x128xf32>
    %15 = arith.addf %10, %14 : vector<8x128xf32>
    %cst_10 = arith.constant 0.000000e+00 : f32
    %16 = vector.broadcast %cst_10 : f32 to vector<8x128xf32>
    %17 = arith.maximumf %15, %16 : vector<8x128xf32>
    %c1_i32 = arith.constant 1 : i32
    %18 = arith.truncf %17 : vector<8x128xf32> to vector<8x128xbf16>
    %19 = arith.index_cast %c1_i32 : i32 to index
    %c0_11 = arith.constant 0 : index
    %c0_12 = arith.constant 0 : index
    %20 = vector.load %arg4[%19, %c0_11, %c0_12] : memref<3x128x128xbf16, #tpu.memory_space<vmem>>, vector<1x128x128xbf16>
    %21 = vector.shape_cast %20 : vector<1x128x128xbf16> to vector<128x128xbf16>
    %cst_13 = arith.constant dense<0.000000e+00> : vector<8x128xf32>
    %22 = tpu.matmul %18, %21, %cst_13 {dimension_numbers = #tpu.dot_dimension_numbers<[1], [0], [0], [1], [0, 0, 1, 1], [], []>} : vector<8x128xbf16>, vector<128x128xbf16>, vector<8x128xf32> -> vector<8x128xf32>
    %23 = arith.index_cast %c1_i32 : i32 to index
    %c0_14 = arith.constant 0 : index
    %c0_15 = arith.constant 0 : index
    %24 = vector.load %arg5[%23, %c0_14, %c0_15] : memref<3x1x128xf32, #tpu.memory_space<vmem>>, vector<1x1x128xf32>
    %25 = vector.shape_cast %24 : vector<1x1x128xf32> to vector<1x128xf32>
    %26 = vector.broadcast %25 : vector<1x128xf32> to vector<8x128xf32>
    %27 = arith.addf %22, %26 : vector<8x128xf32>
    %cst_16 = arith.constant 0.000000e+00 : f32
    %28 = vector.broadcast %cst_16 : f32 to vector<8x128xf32>
    %29 = arith.maximumf %27, %28 : vector<8x128xf32>
    %c2_i32 = arith.constant 2 : i32
    %30 = arith.truncf %29 : vector<8x128xf32> to vector<8x128xbf16>
    %31 = arith.index_cast %c2_i32 : i32 to index
    %c0_17 = arith.constant 0 : index
    %c0_18 = arith.constant 0 : index
    %32 = vector.load %arg4[%31, %c0_17, %c0_18] : memref<3x128x128xbf16, #tpu.memory_space<vmem>>, vector<1x128x128xbf16>
    %33 = vector.shape_cast %32 : vector<1x128x128xbf16> to vector<128x128xbf16>
    %cst_19 = arith.constant dense<0.000000e+00> : vector<8x128xf32>
    %34 = tpu.matmul %30, %33, %cst_19 {dimension_numbers = #tpu.dot_dimension_numbers<[1], [0], [0], [1], [0, 0, 1, 1], [], []>} : vector<8x128xbf16>, vector<128x128xbf16>, vector<8x128xf32> -> vector<8x128xf32>
    %35 = arith.index_cast %c2_i32 : i32 to index
    %c0_20 = arith.constant 0 : index
    %c0_21 = arith.constant 0 : index
    %36 = vector.load %arg5[%35, %c0_20, %c0_21] : memref<3x1x128xf32, #tpu.memory_space<vmem>>, vector<1x1x128xf32>
    %37 = vector.shape_cast %36 : vector<1x1x128xf32> to vector<1x128xf32>
    %38 = vector.broadcast %37 : vector<1x128xf32> to vector<8x128xf32>
    %39 = arith.addf %34, %38 : vector<8x128xf32>
    %cst_22 = arith.constant 0.000000e+00 : f32
    %40 = vector.broadcast %cst_22 : f32 to vector<8x128xf32>
    %41 = arith.maximumf %39, %40 : vector<8x128xf32>
    %c3_i32 = arith.constant 3 : i32
    %42 = arith.truncf %41 : vector<8x128xf32> to vector<8x128xbf16>
    %c0_23 = arith.constant 0 : index
    %c0_24 = arith.constant 0 : index
    %43 = vector.load %arg6[%c0_23, %c0_24] : memref<128x128xbf16, #tpu.memory_space<vmem>>, vector<128x128xbf16>
    %cst_25 = arith.constant dense<0.000000e+00> : vector<8x128xf32>
    %44 = tpu.matmul %42, %43, %cst_25 {dimension_numbers = #tpu.dot_dimension_numbers<[1], [0], [0], [1], [0, 0, 1, 1], [], []>} : vector<8x128xbf16>, vector<128x128xbf16>, vector<8x128xf32> -> vector<8x128xf32>
    %c0_26 = arith.constant 0 : index
    %c0_27 = arith.constant 0 : index
    %45 = vector.load %arg7[%c0_26, %c0_27] : memref<1x128xf32, #tpu.memory_space<vmem>>, vector<1x128xf32>
    %46 = vector.broadcast %45 : vector<1x128xf32> to vector<8x128xf32>
    %47 = arith.addf %44, %46 : vector<8x128xf32>
    %c0_28 = arith.constant 0 : index
    %c0_29 = arith.constant 0 : index
    %48 = vector.load %arg8[%c0_28, %c0_29] : memref<8x128xf32, #tpu.memory_space<vmem>>, vector<8x128xf32>
    tpu.vector_store %arg8[%c0_28, %c0_29], %47 {strides = array<i32>} : memref<8x128xf32, #tpu.memory_space<vmem>>, vector<8x128xf32>,
    return
  }
  func.func @transform_0(%arg0: i32) -> (i32, i32) {
    %c0_i32 = arith.constant 0 : i32
    %c0_i32_0 = arith.constant 0 : i32
    return %arg0, %c0_i32 : i32, i32
  }
  func.func @transform_1(%arg0: i32) -> (i32, i32) {
    %c0_i32 = arith.constant 0 : i32
    %c0_i32_0 = arith.constant 0 : i32
    %c0_i32_1 = arith.constant 0 : i32
    return %c0_i32, %c0_i32_0 : i32, i32
  }
  func.func @transform_2(%arg0: i32) -> (i32, i32) {
    %c0_i32 = arith.constant 0 : i32
    %c0_i32_0 = arith.constant 0 : i32
    %c0_i32_1 = arith.constant 0 : i32
    return %c0_i32, %c0_i32_0 : i32, i32
  }
  func.func @transform_3(%arg0: i32) -> (i32, i32, i32) {
    %c0_i32 = arith.constant 0 : i32
    %c0_i32_0 = arith.constant 0 : i32
    %c0_i32_1 = arith.constant 0 : i32
    %c0_i32_2 = arith.constant 0 : i32
    return %c0_i32, %c0_i32_0, %c0_i32_1 : i32, i32, i32
  }
  func.func @transform_4(%arg0: i32) -> (i32, i32, i32) {
    %c0_i32 = arith.constant 0 : i32
    %c0_i32_0 = arith.constant 0 : i32
    %c0_i32_1 = arith.constant 0 : i32
    %c0_i32_2 = arith.constant 0 : i32
    return %c0_i32, %c0_i32_0, %c0_i32_1 : i32, i32, i32
  }
  func.func @transform_5(%arg0: i32) -> (i32, i32) {
    %c0_i32 = arith.constant 0 : i32
    %c0_i32_0 = arith.constant 0 : i32
    %c0_i32_1 = arith.constant 0 : i32
    return %c0_i32, %c0_i32_0 : i32, i32
  }
  func.func @transform_6(%arg0: i32) -> (i32, i32) {
    %c0_i32 = arith.constant 0 : i32
    %c0_i32_0 = arith.constant 0 : i32
    %c0_i32_1 = arith.constant 0 : i32
    return %c0_i32, %c0_i32_0 : i32, i32
  }
  func.func @transform_7(%arg0: i32) -> (i32, i32) {
    %c0_i32 = arith.constant 0 : i32
    %c0_i32_0 = arith.constant 0 : i32
    return %arg0, %c0_i32 : i32, i32
  }
}

</mosaic_0001>

<llo_original>
// kernel: tpu_custom_call.1
$region0: #{tpu_custom_call.1}
  #allocation0 [shape = 'u32[]', space=smem, size = 0x4, offset = 0x4, fixed_abs, tag = 'smem constant byte address 0x4 - core index']
  #allocation1 [shape = 'u32[72,128]{1,0:T(1,128)}', space=vmem, size = 0x9000, scoped, tag = 'internal scratch']
  %s0 = inlined_call_operand.hbm [shape: bf16[16,128], index: 0, kind: input, shape index: {}]
  %s1 = inlined_call_operand.hbm [shape: bf16[128,128], index: 1, kind: input, shape index: {}]
  %s2 = inlined_call_operand.hbm [shape: f32[1,128], index: 2, kind: input, shape index: {}]
  %s3 = inlined_call_operand.hbm [shape: bf16[3,128,128], index: 3, kind: input, shape index: {}]
  %s4 = inlined_call_operand.vmem [shape: f32[3,1,128], index: 4, kind: input, shape index: {}]
  %s5 = inlined_call_operand.hbm [shape: bf16[128,128], index: 5, kind: input, shape index: {}]
  %s6 = inlined_call_operand.vmem [shape: f32[1,128], index: 6, kind: input, shape index: {}]
  %s7 = inlined_call_operand.hbm [shape: f32[16,128], index: 7, kind: output, shape index: {}]
  %s8 = sld [smem:[#allocation0]]
  $region81: #{tpu_custom_call.1} parent=0
    _
  %s10 = ssub.s32 1, %s8
  %s11 = scalar_select 0, %s10, %s8
  $region1: #{tpu_custom_call.1} parent=0
    #allocation2 [shape = 'u8[4096]{0}', space=vmem, size = 0x1000, scoped, tag = 'input window, operand 0']
    #allocation3 [shape = 's32[2]{0}', space=sflag, size = 0x8, scoped, tag = 'scoped memory for tpu_custom_call.1']
    #allocation4 [shape = 's32[2]{0}', space=sflag, size = 0x8, scoped, tag = 'scoped memory for tpu_custom_call.1']
    #allocation5 [shape = 'u8[32768]{0}', space=vmem, size = 0x8000, scoped, tag = 'input window, operand 1, single buffered']
    #allocation6 [shape = 's32[1]{0}', space=sflag, size = 0x4, scoped, tag = 'scoped memory for tpu_custom_call.1']
    #allocation7 [shape = 'u8[512]{0}', space=vmem, size = 0x400, scoped, tag = 'input window, operand 2, single buffered']
    #allocation8 [shape = 'u8[98304]{0}', space=vmem, size = 0x18000, scoped, tag = 'input window, operand 3, single buffered']
    #allocation9 [shape = 's32[1]{0}', space=sflag, size = 0x4, scoped, tag = 'scoped memory for tpu_custom_call.1']
    #allocation10 [shape = 'u8[32768]{0}', space=vmem, size = 0x8000, scoped, tag = 'input window, operand 5, single buffered']
    #allocation11 [shape = 'u8[8192]{0}', space=vmem, size = 0x2000, scoped, tag = 'output window, operand 0']
    %12 = vsyncpa [#allocation3], 0
    %s13 = scalar_lea.sflag [#allocation3], 1
    %14 = vsyncpa %s13, 0
    %15 = vsyncpa [#allocation6], 0
    %16 = vsyncpa [#allocation9], 0
    %17 = vsyncpa [#allocation4], 0
    %s18 = scalar_lea.sflag [#allocation4], 1
    %19 = vsyncpa %s18, 0
    loop: start=0, step=1, limit=4
    $region2: #{tpu_custom_call.1} parent=1 // loop_pre_header
      _
    $region3: #{tpu_custom_call.1} parent=1 // loop_header
      %s21 = sphi 0, %s25
      %p22 = scmp.ge.s32.totalorder %s21, 4
      %s31 = sphi 0, %s33
      %s34 = sphi 0, %s31
      %s35 = sphi 0, %s34
      %s51 = sphi 0, %s35
      %s55 = sphi 0, %s55
      %s57 = sphi 0, %s55
      %s58 = sphi 0, %s57
      %s72 = sphi 0, %s58
      %s76 = sphi 0, %s76
      %s78 = sphi 0, %s76
      %s79 = sphi 0, %s78
      %s93 = sphi 0, %s79
      %s97 = sphi 0, %s97
      %s99 = sphi 0, %s97
      %s100 = sphi 0, %s99
      %s114 = sphi 0, %s100
      %s118 = sphi 0, %s118
      %s120 = sphi 0, %s118
      %s121 = sphi 0, %s120
      %s135 = sphi 0, %s121
      %s139 = sphi 0, %s139
      %s141 = sphi 0, %s139
      %s142 = sphi 0, %s141
      %s156 = sphi 0, %s142
      %s160 = sphi 0, %s160
      %s162 = sphi 0, %s160
      %s163 = sphi 0, %s162
      %s177 = sphi 0, %s163
      %s183 = sphi 0, %s185
      %s186 = sphi 0, %s183
      %s187 = sphi 0, %s186
      %s203 = sphi 0, %s187
    $region4: #{tpu_custom_call.1} parent=1 // loop_header_branch
      %24 = sbr.rel (%p22) target = $region8
    $region5: #{tpu_custom_call.1} parent=1 // loop_body
      %s26 = ssub.s32 %s21, 1
      %s27 = ssub.s32 %s21, 2
      %s28 = sadd.s32 %s21, 1
      %s29 = ssub.s32 %s21, %s28
      %p30 = scmp.eq.s32.totalorder %s29, 0
      %s32 = sadd.s32 %s31, 1
      %s33 = scalar_select %p30, %s31, %s32
      %p36 = pneg %p30
      %p37 = scmp.eq.s32.totalorder %s21, 1
      %p38 = por %p36, %p37
      %p39 = scmp.ne.s32.totalorder %s31, %s34
      %p40 = scmp.eq.s32.totalorder %s21, 0
      %p41 = por %p39, %p40
      %p42 = scmp.ne.s32.totalorder %s31, %s34
      %p43 = scmp.eq.s32.totalorder %s26, 1
      %p44 = por %p42, %p43
      %p45 = scmp.ne.s32.totalorder %s34, %s35
      %p46 = scmp.eq.s32.totalorder %s26, 0
      %p47 = por %p45, %p46
      %p48 = scmp.ne.s32.totalorder %s34, %s35
      %p49 = scmp.eq.s32.totalorder %s27, 1
      %p50 = por %p48, %p49
      %p52 = scmp.ne.s32.totalorder %s35, %s51
      %p53 = scmp.eq.s32.totalorder %s27, 0
      %p54 = por %p52, %p53
      %s56 = sadd.s32 %s55, 1
      %p59 = scmp.eq.s32.totalorder %s21, 1
      %p60 = scmp.ne.s32.totalorder %s55, %s57
      %p61 = scmp.eq.s32.totalorder %s21, 0
      %p62 = por %p60, %p61
      %p63 = scmp.ne.s32.totalorder %s55, %s57
      %p64 = scmp.eq.s32.totalorder %s26, 1
      %p65 = por %p63, %p64
      %p66 = scmp.ne.s32.totalorder %s57, %s58
      %p67 = scmp.eq.s32.totalorder %s26, 0
      %p68 = por %p66, %p67
      %p69 = scmp.ne.s32.totalorder %s57, %s58
      %p70 = scmp.eq.s32.totalorder %s27, 1
      %p71 = por %p69, %p70
      %p73 = scmp.ne.s32.totalorder %s58, %s72
      %p74 = scmp.eq.s32.totalorder %s27, 0
      %p75 = por %p73, %p74
      %s77 = sadd.s32 %s76, 1
      %p80 = scmp.eq.s32.totalorder %s21, 1
      %p81 = scmp.ne.s32.totalorder %s76, %s78
      %p82 = scmp.eq.s32.totalorder %s21, 0
      %p83 = por %p81, %p82
      %p84 = scmp.ne.s32.totalorder %s76, %s78
      %p85 = scmp.eq.s32.totalorder %s26, 1
      %p86 = por %p84, %p85
      %p87 = scmp.ne.s32.totalorder %s78, %s79
      %p88 = scmp.eq.s32.totalorder %s26, 0
      %p89 = por %p87, %p88
      %p90 = scmp.ne.s32.totalorder %s78, %s79
      %p91 = scmp.eq.s32.totalorder %s27, 1
      %p92 = por %p90, %p91
      %p94 = scmp.ne.s32.totalorder %s79, %s93
      %p95 = scmp.eq.s32.totalorder %s27, 0
      %p96 = por %p94, %p95
      %s98 = sadd.s32 %s97, 1
      %p101 = scmp.eq.s32.totalorder %s21, 1
      %p102 = scmp.ne.s32.totalorder %s97, %s99
      %p103 = scmp.eq.s32.totalorder %s21, 0
      %p104 = por %p102, %p103
      %p105 = scmp.ne.s32.totalorder %s97, %s99
      %p106 = scmp.eq.s32.totalorder %s26, 1
      %p107 = por %p105, %p106
      %p108 = scmp.ne.s32.totalorder %s99, %s100
      %p109 = scmp.eq.s32.totalorder %s26, 0
      %p110 = por %p108, %p109
      %p111 = scmp.ne.s32.totalorder %s99, %s100
      %p112 = scmp.eq.s32.totalorder %s27, 1
      %p113 = por %p111, %p112
      %p115 = scmp.ne.s32.totalorder %s100, %s114
      %p116 = scmp.eq.s32.totalorder %s27, 0
      %p117 = por %p115, %p116
      %s119 = sadd.s32 %s118, 1
      %p122 = scmp.eq.s32.totalorder %s21, 1
      %p123 = scmp.ne.s32.totalorder %s118, %s120
      %p124 = scmp.eq.s32.totalorder %s21, 0
      %p125 = por %p123, %p124
      %p126 = scmp.ne.s32.totalorder %s118, %s120
      %p127 = scmp.eq.s32.totalorder %s26, 1
      %p128 = por %p126, %p127
      %p129 = scmp.ne.s32.totalorder %s120, %s121
      %p130 = scmp.eq.s32.totalorder %s26, 0
      %p131 = por %p129, %p130
      %p132 = scmp.ne.s32.totalorder %s120, %s121
      %p133 = scmp.eq.s32.totalorder %s27, 1
      %p134 = por %p132, %p133
      %p136 = scmp.ne.s32.totalorder %s121, %s135
      %p137 = scmp.eq.s32.totalorder %s27, 0
      %p138 = por %p136, %p137
      %s140 = sadd.s32 %s139, 1
      %p143 = scmp.eq.s32.totalorder %s21, 1
      %p144 = scmp.ne.s32.totalorder %s139, %s141
      %p145 = scmp.eq.s32.totalorder %s21, 0
      %p146 = por %p144, %p145
      %p147 = scmp.ne.s32.totalorder %s139, %s141
      %p148 = scmp.eq.s32.totalorder %s26, 1
      %p149 = por %p147, %p148
      %p150 = scmp.ne.s32.totalorder %s141, %s142
      %p151 = scmp.eq.s32.totalorder %s26, 0
      %p152 = por %p150, %p151
      %p153 = scmp.ne.s32.totalorder %s141, %s142
      %p154 = scmp.eq.s32.totalorder %s27, 1
      %p155 = por %p153, %p154
      %p157 = scmp.ne.s32.totalorder %s142, %s156
      %p158 = scmp.eq.s32.totalorder %s27, 0
      %p159 = por %p157, %p158
      %s161 = sadd.s32 %s160, 1
      %p164 = scmp.eq.s32.totalorder %s21, 1
      %p165 = scmp.ne.s32.totalorder %s160, %s162
      %p166 = scmp.eq.s32.totalorder %s21, 0
      %p167 = por %p165, %p166
      %p168 = scmp.ne.s32.totalorder %s160, %s162
      %p169 = scmp.eq.s32.totalorder %s26, 1
      %p170 = por %p168, %p169
      %p171 = scmp.ne.s32.totalorder %s162, %s163
      %p172 = scmp.eq.s32.totalorder %s26, 0
      %p173 = por %p171, %p172
      %p174 = scmp.ne.s32.totalorder %s162, %s163
      %p175 = scmp.eq.s32.totalorder %s27, 1
      %p176 = por %p174, %p175
      %p178 = scmp.ne.s32.totalorder %s163, %s177
      %p179 = scmp.eq.s32.totalorder %s27, 0
      %p180 = por %p178, %p179
      %s181 = ssub.s32 %s21, %s28
      %p182 = scmp.eq.s32.totalorder %s181, 0
      %s184 = sadd.s32 %s183, 1
      %s185 = scalar_select %p182, %s183, %s184
      %p188 = pneg %p182
      %p189 = scmp.eq.s32.totalorder %s21, 1
      %p190 = por %p188, %p189
      %p191 = scmp.ne.s32.totalorder %s183, %s186
      %p192 = scmp.eq.s32.totalorder %s21, 0
      %p193 = por %p191, %p192
      %p194 = scmp.ne.s32.totalorder %s183, %s186
      %p195 = scmp.eq.s32.totalorder %s26, 1
      %p196 = por %p194, %p195
      %p197 = scmp.ne.s32.totalorder %s186, %s187
      %p198 = scmp.eq.s32.totalorder %s26, 0
      %p199 = por %p197, %p198
      %p200 = scmp.ne.s32.totalorder %s186, %s187
      %p201 = scmp.eq.s32.totalorder %s27, 1
      %p202 = por %p200, %p201
      %p204 = scmp.ne.s32.totalorder %s187, %s203
      %p205 = scmp.eq.s32.totalorder %s27, 0
      %p206 = por %p204, %p205
      %p207 = scmp.le.s32.totalorder 1, %s21
      %p208 = scmp.lt.s32.totalorder %s21, 3
      %p209 = pnand %p207, %p208
      %p210 = pneg %p209
      // Predicated region
      $region9: #{tpu_custom_call.1} parent=5 // pred_check
        _
      $region10: #{tpu_custom_call.1} parent=5 // pred_check_branch
        %212 = sbr.rel (%p209) target = $region12
      $region11: #{tpu_custom_call.1} parent=5 // pred_region
        %s213 = ssub.s32 %s21, 1
        // Predicated region
        $region13: #{tpu_custom_call.1} parent=11 // pred_check
          %p214 = pneg %p68
        $region14: #{tpu_custom_call.1} parent=11 // pred_check_branch
          %216 = sbr.rel (%p214) target = $region16
        $region15: #{tpu_custom_call.1} parent=11 // pred_region
          %218 = vsyncadd [#allocation6], 0
          %s219 = sshll.u32 %s1, 4
          %s220 = int_to_ptr.hbm [resolvable:$true] %s219
          %s221 = sshll.u32 [#allocation5], 4
          %s222 = int_to_ptr.vmem [resolvable:$true] %s221
          %227 = dma.hbm_to_vmem [thread:$0]  %s220, 1024, %s222, [#allocation6], 64, 64, 4
        $region16: #{tpu_custom_call.1} parent=11 // pred_fallthru
          _
        // Predicated region
        $region17: #{tpu_custom_call.1} parent=11 // pred_check
          %p228 = pneg %p89
        $region18: #{tpu_custom_call.1} parent=11 // pred_check_branch
          %230 = sbr.rel (%p228) target = $region20
        $region19: #{tpu_custom_call.1} parent=11 // pred_region
          %232 = vsyncadd [#allocation6], 0
          %s234 = sshll.u32 %s2, 4
          %s235 = int_to_ptr.hbm [resolvable:$true] %s234
          %s236 = sshll.u32 [#allocation7], 4
          %s237 = int_to_ptr.vmem [resolvable:$true] %s236
          %239 = dma.hbm_to_vmem [thread:$0]  %s235, 16, %s237, [#allocation6]
        $region20: #{tpu_custom_call.1} parent=11 // pred_fallthru
          _
        // Predicated region
        $region21: #{tpu_custom_call.1} parent=11 // pred_check
          %p240 = pneg %p110
        $region22: #{tpu_custom_call.1} parent=11 // pred_check_branch
          %242 = sbr.rel (%p240) target = $region24
        $region23: #{tpu_custom_call.1} parent=11 // pred_region
          %244 = vsyncadd [#allocation9], 0
          %s245 = sshll.u32 %s3, 4
          %s246 = int_to_ptr.hbm [resolvable:$true] %s245
          %s247 = sshll.u32 [#allocation8], 4
          %s248 = int_to_ptr.vmem [resolvable:$true] %s247
          %253 = dma.hbm_to_vmem [thread:$0]  %s246, 3072, %s248, [#allocation9], 64, 64, 4
        $region24: #{tpu_custom_call.1} parent=11 // pred_fallthru
          _
        // Predicated region
        $region25: #{tpu_custom_call.1} parent=11 // pred_check
          %p254 = pneg %p131
        $region26: #{tpu_custom_call.1} parent=11 // pred_check_branch
          %256 = sbr.rel (%p254) target = $region28
        $region27: #{tpu_custom_call.1} parent=11 // pred_region
          _
        $region28: #{tpu_custom_call.1} parent=11 // pred_fallthru
          _
        // Predicated region
        $region29: #{tpu_custom_call.1} parent=11 // pred_check
          %p257 = pneg %p152
        $region30: #{tpu_custom_call.1} parent=11 // pred_check_branch
          %259 = sbr.rel (%p257) target = $region32
        $region31: #{tpu_custom_call.1} parent=11 // pred_region
          %261 = vsyncadd [#allocation9], 0
          %s262 = sshll.u32 %s5, 4
          %s263 = int_to_ptr.hbm [resolvable:$true] %s262
          %s264 = sshll.u32 [#allocation10], 4
          %s265 = int_to_ptr.vmem [resolvable:$true] %s264
          %270 = dma.hbm_to_vmem [thread:$0]  %s263, 1024, %s265, [#allocation9], 64, 64, 4
        $region32: #{tpu_custom_call.1} parent=11 // pred_fallthru
          _
        // Predicated region
        $region33: #{tpu_custom_call.1} parent=11 // pred_check
          %p271 = pneg %p173
        $region34: #{tpu_custom_call.1} parent=11 // pred_check_branch
          %273 = sbr.rel (%p271) target = $region36
        $region35: #{tpu_custom_call.1} parent=11 // pred_region
          _
        $region36: #{tpu_custom_call.1} parent=11 // pred_fallthru
          _
      $region12: #{tpu_custom_call.1} parent=5 // pred_fallthru
        _
      %p274 = scmp.lt.s32.totalorder %s21, 2
      // Predicated region
      $region37: #{tpu_custom_call.1} parent=5 // pred_check
        %p275 = pneg %p274
      $region38: #{tpu_custom_call.1} parent=5 // pred_check_branch
        %277 = sbr.rel (%p275) target = $region40
      $region39: #{tpu_custom_call.1} parent=5 // pred_region
        // Predicated region
        $region41: #{tpu_custom_call.1} parent=39 // pred_check
          %p278 = pneg %p41
        $region42: #{tpu_custom_call.1} parent=39 // pred_check_branch
          %280 = sbr.rel (%p278) target = $region44
        $region43: #{tpu_custom_call.1} parent=39 // pred_region
          %s281 = sand.u32 %s31, 1
          %s282 = scalar_lea.sflag [#allocation3], %s281
          %s283 = sand.u32 %s31, 1
          %s284 = smul.addr %s283, 4
          %s285 = scalar_lea.vmem [#allocation2], %s284
          %287 = vsyncadd %s282, 0
          %s288 = smul.addr %s21, 4
          %s289 = scalar_lea.hbm %s0, %s288
          %s291 = sshll.u32 %s289, 4
          %s292 = int_to_ptr.hbm [resolvable:$true] %s291
          %s293 = sshll.u32 %s285, 4
          %s294 = int_to_ptr.vmem [resolvable:$true] %s293
          %296 = dma.hbm_to_vmem [thread:$0]  %s292, 64, %s294, %s282
        $region44: #{tpu_custom_call.1} parent=39 // pred_fallthru
          _
      $region40: #{tpu_custom_call.1} parent=5 // pred_fallthru
        _
      %p297 = scmp.le.s32.totalorder 1, %s21
      %p298 = scmp.lt.s32.totalorder %s21, 3
      %p299 = pnand %p297, %p298
      %p300 = pneg %p299
      // Predicated region
      $region45: #{tpu_custom_call.1} parent=5 // pred_check
        _
      $region46: #{tpu_custom_call.1} parent=5 // pred_check_branch
        %302 = sbr.rel (%p299) target = $region48
      $region47: #{tpu_custom_call.1} parent=5 // pred_region
        %s303 = ssub.s32 %s21, 1
        %s304 = sand.u32 %s34, 1
        %s305 = scalar_lea.sflag [#allocation3], %s304
        %s306 = sand.u32 %s34, 1
        %s307 = smul.addr %s306, 4
        %s308 = scalar_lea.vmem [#allocation2], %s307
        // Predicated region
        $region49: #{tpu_custom_call.1} parent=47 // pred_check
          %p309 = pneg %p47
        $region50: #{tpu_custom_call.1} parent=47 // pred_check_branch
          %311 = sbr.rel (%p309) target = $region52
        $region51: #{tpu_custom_call.1} parent=47 // pred_region
          %313 = dma.done %s305, 64
        $region52: #{tpu_custom_call.1} parent=47 // pred_fallthru
          _
        // Predicated region
        $region53: #{tpu_custom_call.1} parent=47 // pred_check
          %p314 = pneg %p68
        $region54: #{tpu_custom_call.1} parent=47 // pred_check_branch
          %316 = sbr.rel (%p314) target = $region56
        $region55: #{tpu_custom_call.1} parent=47 // pred_region
          %318 = dma.done [#allocation6], 1024
        $region56: #{tpu_custom_call.1} parent=47 // pred_fallthru
          _
        // Predicated region
        $region57: #{tpu_custom_call.1} parent=47 // pred_check
          %p319 = pneg %p89
        $region58: #{tpu_custom_call.1} parent=47 // pred_check_branch
          %321 = sbr.rel (%p319) target = $region60
        $region59: #{tpu_custom_call.1} parent=47 // pred_region
          %323 = dma.done [#allocation6], 16
        $region60: #{tpu_custom_call.1} parent=47 // pred_fallthru
          _
        // Predicated region
        $region61: #{tpu_custom_call.1} parent=47 // pred_check
          %p324 = pneg %p110
        $region62: #{tpu_custom_call.1} parent=47 // pred_check_branch
          %326 = sbr.rel (%p324) target = $region64
        $region63: #{tpu_custom_call.1} parent=47 // pred_region
          %328 = dma.done [#allocation9], 3072
        $region64: #{tpu_custom_call.1} parent=47 // pred_fallthru
          _
        // Predicated region
        $region65: #{tpu_custom_call.1} parent=47 // pred_check
          %p329 = pneg %p152
        $region66: #{tpu_custom_call.1} parent=47 // pred_check_branch
          %331 = sbr.rel (%p329) target = $region68
        $region67: #{tpu_custom_call.1} parent=47 // pred_region
          %333 = dma.done [#allocation9], 1024
        $region68: #{tpu_custom_call.1} parent=47 // pred_fallthru
          _
        %s334 = sand.u32 %s34, 1
        %s335 = scalar_lea.sflag [#allocation3], %s334
        %s336 = sand.u32 %s34, 1
        %s337 = smul.addr %s336, 4
        %s338 = scalar_lea.vmem [#allocation2], %s337
        %p339 = pneg %p47
        %p340 = pneg %p44
        %p341 = pneg %p68
        %p342 = pneg %p65
        %p343 = pneg %p89
        %p344 = pneg %p86
        %p345 = pneg %p110
        %p346 = pneg %p107
        %p347 = pneg %p131
        %p348 = pneg %p128
        %p349 = pneg %p152
        %p350 = pneg %p149
        %p351 = pneg %p173
        %p352 = pneg %p170
        %p353 = pneg %p199
        %p354 = pneg %p196
        %s355 = sand.u32 %s186, 1
        %s356 = scalar_lea.sflag [#allocation4], %s355
        %s357 = sand.u32 %s186, 1
        %s358 = smul.addr %s357, 8
        %s359 = scalar_lea.vmem [#allocation11], %s358
        %v360 = vld [vmem:[%s308] sm:$0xf]
        %v361 = vld [vmem:[#allocation5] sm:$0xf]
        %v362 = vld [vmem:[#allocation5 + $0x4] sm:$0xf]
        %v363 = vld [vmem:[#allocation5 + $0x8] sm:$0xf]
        %v364 = vld [vmem:[#allocation5 + $0xc] sm:$0xf]
        %v365 = vld [vmem:[#allocation5 + $0x10] sm:$0xf]
        %v366 = vld [vmem:[#allocation5 + $0x14] sm:$0xf]
        %v367 = vld [vmem:[#allocation5 + $0x18] sm:$0xf]
        %v368 = vld [vmem:[#allocation5 + $0x1c] sm:$0xf]
        %v369 = vld [vmem:[#allocation5 + $0x20] sm:$0xf]
        %v370 = vld [vmem:[#allocation5 + $0x24] sm:$0xf]
        %v371 = vld [vmem:[#allocation5 + $0x28] sm:$0xf]
        %v372 = vld [vmem:[#allocation5 + $0x2c] sm:$0xf]
        %v373 = vld [vmem:[#allocation5 + $0x30] sm:$0xf]
        %v374 = vld [vmem:[#allocation5 + $0x34] sm:$0xf]
        %v375 = vld [vmem:[#allocation5 + $0x38] sm:$0xf]
        %v376 = vld [vmem:[#allocation5 + $0x3c] sm:$0xf]
        %v377 = vld [vmem:[#allocation7] sm:$0x1]
        %v379 = vperm.slane %v377, 0
        %v397 = vunpack.c.l.b16 %v361
        %v398 = vunpack.c.l.b16 %v362
        %v399 = vunpack.c.l.b16 %v363
        %v400 = vunpack.c.l.b16 %v364
        %v401 = vunpack.c.l.b16 %v365
        %v402 = vunpack.c.l.b16 %v366
        %v403 = vunpack.c.l.b16 %v367
        %v404 = vunpack.c.l.b16 %v368
        %v405 = vunpack.c.l.b16 %v369
        %v406 = vunpack.c.l.b16 %v370
        %v407 = vunpack.c.l.b16 %v371
        %v408 = vunpack.c.l.b16 %v372
        %v409 = vunpack.c.l.b16 %v373
        %v410 = vunpack.c.l.b16 %v374
        %v411 = vunpack.c.l.b16 %v375
        %v412 = vunpack.c.l.b16 %v376
        %v413 = vpack.c.b16 %v398, %v397
        %v414 = vpack.c.b16 %v400, %v399
        %v415 = vpack.c.b16 %v402, %v401
        %v416 = vpack.c.b16 %v404, %v403
        %v417 = vpack.c.b16 %v406, %v405
        %v418 = vpack.c.b16 %v408, %v407
        %v419 = vpack.c.b16 %v410, %v409
        %v420 = vpack.c.b16 %v412, %v411
        %429 = vmatpush.bf16.msra.mxu0 %v420
        %430 = vmatpush.bf16.msra.mxu0 %v419
        %431 = vmatpush.bf16.msra.mxu0 %v418
        %432 = vmatpush.bf16.msra.mxu0 %v417
        %433 = vmatpush.bf16.msra.mxu0 %v416
        %434 = vmatpush.bf16.msra.mxu0 %v415
        %435 = vmatpush.bf16.msra.mxu0 %v414
        %436 = vmatpush.bf16.msra.mxu0 %v413
        %437 = vmatmul.bf16.gmra.mxu0 %v360
        %v438 = vpop.f32.mrf.mxu0
        %v439 = vadd.f32 %v379, %v438
        %v440 = vpop.f32.mrf.mxu0
        %441 = vdwg.mxu0
        %v442 = vpack.c.bf16 %v439, %v439
        %v443 = vld [vmem:[#allocation8] sm:$0xf]
        %v444 = vld [vmem:[#allocation8 + $0x4] sm:$0xf]
        %v445 = vld [vmem:[#allocation8 + $0x8] sm:$0xf]
        %v446 = vld [vmem:[#allocation8 + $0xc] sm:$0xf]
        %v447 = vld [vmem:[#allocation8 + $0x10] sm:$0xf]
        %v448 = vld [vmem:[#allocation8 + $0x14] sm:$0xf]
        %v449 = vld [vmem:[#allocation8 + $0x18] sm:$0xf]
        %v450 = vld [vmem:[#allocation8 + $0x1c] sm:$0xf]
        %v451 = vld [vmem:[#allocation8 + $0x20] sm:$0xf]
        %v452 = vld [vmem:[#allocation8 + $0x24] sm:$0xf]
        %v453 = vld [vmem:[#allocation8 + $0x28] sm:$0xf]
        %v454 = vld [vmem:[#allocation8 + $0x2c] sm:$0xf]
        %v455 = vld [vmem:[#allocation8 + $0x30] sm:$0xf]
        %v456 = vld [vmem:[#allocation8 + $0x34] sm:$0xf]
        %v457 = vld [vmem:[#allocation8 + $0x38] sm:$0xf]
        %v458 = vld [vmem:[#allocation8 + $0x3c] sm:$0xf]
        %v459 = vld [vmem:[%s4] sm:$0x1]
        %v461 = vperm.slane %v459, 0
        %v479 = vunpack.c.l.b16 %v443
        %v480 = vunpack.c.l.b16 %v444
        %v481 = vunpack.c.l.b16 %v445
        %v482 = vunpack.c.l.b16 %v446
        %v483 = vunpack.c.l.b16 %v447
        %v484 = vunpack.c.l.b16 %v448
        %v485 = vunpack.c.l.b16 %v449
        %v486 = vunpack.c.l.b16 %v450
        %v487 = vunpack.c.l.b16 %v451
        %v488 = vunpack.c.l.b16 %v452
        %v489 = vunpack.c.l.b16 %v453
        %v490 = vunpack.c.l.b16 %v454
        %v491 = vunpack.c.l.b16 %v455
        %v492 = vunpack.c.l.b16 %v456
        %v493 = vunpack.c.l.b16 %v457
        %v494 = vunpack.c.l.b16 %v458
        %v495 = vpack.c.b16 %v480, %v479
        %v496 = vpack.c.b16 %v482, %v481
        %v497 = vpack.c.b16 %v484, %v483
        %v498 = vpack.c.b16 %v486, %v485
        %v499 = vpack.c.b16 %v488, %v487
        %v500 = vpack.c.b16 %v490, %v489
        %v501 = vpack.c.b16 %v492, %v491
        %v502 = vpack.c.b16 %v494, %v493
        %511 = vmatpush.bf16.msra.mxu0 %v502
        %512 = vmatpush.bf16.msra.mxu0 %v501
        %513 = vmatpush.bf16.msra.mxu0 %v500
        %514 = vmatpush.bf16.msra.mxu0 %v499
        %515 = vmatpush.bf16.msra.mxu0 %v498
        %516 = vmatpush.bf16.msra.mxu0 %v497
        %517 = vmatpush.bf16.msra.mxu0 %v496
        %518 = vmatpush.bf16.msra.mxu0 %v495
        %519 = vmatmul.bf16.gmra.mxu0 %v442
        %v520 = vpop.f32.mrf.mxu0
        %v521 = vadd.f32 %v461, %v520
        %v522 = vpop.f32.mrf.mxu0
        %523 = vdwg.mxu0
        %v524 = vmax.f32 %v521, 0.0
        %v525 = vpack.c.bf16 %v524, %v524
        %s526 = scalar_lea.vmem [#allocation8], 64
        %v527 = vld [vmem:[%s526] sm:$0xf]
        %v528 = vld [vmem:[%s526 + $0x4] sm:$0xf]
        %v529 = vld [vmem:[%s526 + $0x8] sm:$0xf]
        %v530 = vld [vmem:[%s526 + $0xc] sm:$0xf]
        %v531 = vld [vmem:[%s526 + $0x10] sm:$0xf]
        %v532 = vld [vmem:[%s526 + $0x14] sm:$0xf]
        %v533 = vld [vmem:[%s526 + $0x18] sm:$0xf]
        %v534 = vld [vmem:[%s526 + $0x1c] sm:$0xf]
        %v535 = vld [vmem:[%s526 + $0x20] sm:$0xf]
        %v536 = vld [vmem:[%s526 + $0x24] sm:$0xf]
        %v537 = vld [vmem:[%s526 + $0x28] sm:$0xf]
        %v538 = vld [vmem:[%s526 + $0x2c] sm:$0xf]
        %v539 = vld [vmem:[%s526 + $0x30] sm:$0xf]
        %v540 = vld [vmem:[%s526 + $0x34] sm:$0xf]
        %v541 = vld [vmem:[%s526 + $0x38] sm:$0xf]
        %v542 = vld [vmem:[%s526 + $0x3c] sm:$0xf]
        %s543 = scalar_lea.vmem %s4, 1
        %v544 = vld [vmem:[%s543] sm:$0x1]
        %v546 = vperm.slane %v544, 0
        %v564 = vunpack.c.l.b16 %v527
        %v565 = vunpack.c.l.b16 %v528
        %v566 = vunpack.c.l.b16 %v529
        %v567 = vunpack.c.l.b16 %v530
        %v568 = vunpack.c.l.b16 %v531
        %v569 = vunpack.c.l.b16 %v532
        %v570 = vunpack.c.l.b16 %v533
        %v571 = vunpack.c.l.b16 %v534
        %v572 = vunpack.c.l.b16 %v535
        %v573 = vunpack.c.l.b16 %v536
        %v574 = vunpack.c.l.b16 %v537
        %v575 = vunpack.c.l.b16 %v538
        %v576 = vunpack.c.l.b16 %v539
        %v577 = vunpack.c.l.b16 %v540
        %v578 = vunpack.c.l.b16 %v541
        %v579 = vunpack.c.l.b16 %v542
        %v580 = vpack.c.b16 %v565, %v564
        %v581 = vpack.c.b16 %v567, %v566
        %v582 = vpack.c.b16 %v569, %v568
        %v583 = vpack.c.b16 %v571, %v570
        %v584 = vpack.c.b16 %v573, %v572
        %v585 = vpack.c.b16 %v575, %v574
        %v586 = vpack.c.b16 %v577, %v576
        %v587 = vpack.c.b16 %v579, %v578
        %596 = vmatpush.bf16.msra.mxu0 %v587
        %597 = vmatpush.bf16.msra.mxu0 %v586
        %598 = vmatpush.bf16.msra.mxu0 %v585
        %599 = vmatpush.bf16.msra.mxu0 %v584
        %600 = vmatpush.bf16.msra.mxu0 %v583
        %601 = vmatpush.bf16.msra.mxu0 %v582
        %602 = vmatpush.bf16.msra.mxu0 %v581
        %603 = vmatpush.bf16.msra.mxu0 %v580
        %604 = vmatmul.bf16.gmra.mxu0 %v525
        %v605 = vpop.f32.mrf.mxu0
        %v606 = vadd.f32 %v546, %v605
        %v607 = vpop.f32.mrf.mxu0
        %608 = vdwg.mxu0
        %v609 = vmax.f32 %v606, 0.0
        %v610 = vpack.c.bf16 %v609, %v609
        %s611 = scalar_lea.vmem [#allocation8], 128
        %v612 = vld [vmem:[%s611] sm:$0xf]
        %v613 = vld [vmem:[%s611 + $0x4] sm:$0xf]
        %v614 = vld [vmem:[%s611 + $0x8] sm:$0xf]
        %v615 = vld [vmem:[%s611 + $0xc] sm:$0xf]
        %v616 = vld [vmem:[%s611 + $0x10] sm:$0xf]
        %v617 = vld [vmem:[%s611 + $0x14] sm:$0xf]
        %v618 = vld [vmem:[%s611 + $0x18] sm:$0xf]
        %v619 = vld [vmem:[%s611 + $0x1c] sm:$0xf]
        %v620 = vld [vmem:[%s611 + $0x20] sm:$0xf]
        %v621 = vld [vmem:[%s611 + $0x24] sm:$0xf]
        %v622 = vld [vmem:[%s611 + $0x28] sm:$0xf]
        %v623 = vld [vmem:[%s611 + $0x2c] sm:$0xf]
        %v624 = vld [vmem:[%s611 + $0x30] sm:$0xf]
        %v625 = vld [vmem:[%s611 + $0x34] sm:$0xf]
        %v626 = vld [vmem:[%s611 + $0x38] sm:$0xf]
        %v627 = vld [vmem:[%s611 + $0x3c] sm:$0xf]
        %s628 = scalar_lea.vmem %s4, 2
        %v629 = vld [vmem:[%s628] sm:$0x1]
        %v631 = vperm.slane %v629, 0
        %v649 = vunpack.c.l.b16 %v612
        %v650 = vunpack.c.l.b16 %v613
        %v651 = vunpack.c.l.b16 %v614
        %v652 = vunpack.c.l.b16 %v615
        %v653 = vunpack.c.l.b16 %v616
        %v654 = vunpack.c.l.b16 %v617
        %v655 = vunpack.c.l.b16 %v618
        %v656 = vunpack.c.l.b16 %v619
        %v657 = vunpack.c.l.b16 %v620
        %v658 = vunpack.c.l.b16 %v621
        %v659 = vunpack.c.l.b16 %v622
        %v660 = vunpack.c.l.b16 %v623
        %v661 = vunpack.c.l.b16 %v624
        %v662 = vunpack.c.l.b16 %v625
        %v663 = vunpack.c.l.b16 %v626
        %v664 = vunpack.c.l.b16 %v627
        %v665 = vpack.c.b16 %v650, %v649
        %v666 = vpack.c.b16 %v652, %v651
        %v667 = vpack.c.b16 %v654, %v653
        %v668 = vpack.c.b16 %v656, %v655
        %v669 = vpack.c.b16 %v658, %v657
        %v670 = vpack.c.b16 %v660, %v659
        %v671 = vpack.c.b16 %v662, %v661
        %v672 = vpack.c.b16 %v664, %v663
        %681 = vmatpush.bf16.msra.mxu0 %v672
        %682 = vmatpush.bf16.msra.mxu0 %v671
        %683 = vmatpush.bf16.msra.mxu0 %v670
        %684 = vmatpush.bf16.msra.mxu0 %v669
        %685 = vmatpush.bf16.msra.mxu0 %v668
        %686 = vmatpush.bf16.msra.mxu0 %v667
        %687 = vmatpush.bf16.msra.mxu0 %v666
        %688 = vmatpush.bf16.msra.mxu0 %v665
        %689 = vmatmul.bf16.gmra.mxu0 %v610
        %v690 = vpop.f32.mrf.mxu0
        %v691 = vadd.f32 %v631, %v690
        %v692 = vpop.f32.mrf.mxu0
        %693 = vdwg.mxu0
        %v694 = vmax.f32 %v691, 0.0
        %v695 = vpack.c.bf16 %v694, %v694
        %v696 = vld [vmem:[#allocation10] sm:$0xf]
        %v697 = vld [vmem:[#allocation10 + $0x4] sm:$0xf]
        %v698 = vld [vmem:[#allocation10 + $0x8] sm:$0xf]
        %v699 = vld [vmem:[#allocation10 + $0xc] sm:$0xf]
        %v700 = vld [vmem:[#allocation10 + $0x10] sm:$0xf]
        %v701 = vld [vmem:[#allocation10 + $0x14] sm:$0xf]
        %v702 = vld [vmem:[#allocation10 + $0x18] sm:$0xf]
        %v703 = vld [vmem:[#allocation10 + $0x1c] sm:$0xf]
        %v704 = vld [vmem:[#allocation10 + $0x20] sm:$0xf]
        %v705 = vld [vmem:[#allocation10 + $0x24] sm:$0xf]
        %v706 = vld [vmem:[#allocation10 + $0x28] sm:$0xf]
        %v707 = vld [vmem:[#allocation10 + $0x2c] sm:$0xf]
        %v708 = vld [vmem:[#allocation10 + $0x30] sm:$0xf]
        %v709 = vld [vmem:[#allocation10 + $0x34] sm:$0xf]
        %v710 = vld [vmem:[#allocation10 + $0x38] sm:$0xf]
        %v711 = vld [vmem:[#allocation10 + $0x3c] sm:$0xf]
        %v712 = vld [vmem:[%s6] sm:$0x1]
        %v714 = vperm.slane %v712, 0
        %v732 = vunpack.c.l.b16 %v696
        %v733 = vunpack.c.l.b16 %v697
        %v734 = vunpack.c.l.b16 %v698
        %v735 = vunpack.c.l.b16 %v699
        %v736 = vunpack.c.l.b16 %v700
        %v737 = vunpack.c.l.b16 %v701
        %v738 = vunpack.c.l.b16 %v702
        %v739 = vunpack.c.l.b16 %v703
        %v740 = vunpack.c.l.b16 %v704
        %v741 = vunpack.c.l.b16 %v705
        %v742 = vunpack.c.l.b16 %v706
        %v743 = vunpack.c.l.b16 %v707
        %v744 = vunpack.c.l.b16 %v708
        %v745 = vunpack.c.l.b16 %v709
        %v746 = vunpack.c.l.b16 %v710
        %v747 = vunpack.c.l.b16 %v711
        %v748 = vpack.c.b16 %v733, %v732
        %v749 = vpack.c.b16 %v735, %v734
        %v750 = vpack.c.b16 %v737, %v736
        %v751 = vpack.c.b16 %v739, %v738
        %v752 = vpack.c.b16 %v741, %v740
        %v753 = vpack.c.b16 %v743, %v742
        %v754 = vpack.c.b16 %v745, %v744
        %v755 = vpack.c.b16 %v747, %v746
        %764 = vmatpush.bf16.msra.mxu0 %v755
        %765 = vmatpush.bf16.msra.mxu0 %v754
        %766 = vmatpush.bf16.msra.mxu0 %v753
        %767 = vmatpush.bf16.msra.mxu0 %v752
        %768 = vmatpush.bf16.msra.mxu0 %v751
        %769 = vmatpush.bf16.msra.mxu0 %v750
        %770 = vmatpush.bf16.msra.mxu0 %v749
        %771 = vmatpush.bf16.msra.mxu0 %v748
        %772 = vmatmul.bf16.gmra.mxu0 %v695
        %v773 = vpop.f32.mrf.mxu0
        %v774 = vadd.f32 %v714, %v773
        %v775 = vpop.f32.mrf.mxu0
        %776 = vdwg.mxu0
        %777 = vst [vmem:[%s359] sm:$0xff] %v774
        %s778 = sand.u32 %s186, 1
        %s779 = scalar_lea.sflag [#allocation4], %s778
        %s780 = sand.u32 %s186, 1
        %s781 = smul.addr %s780, 8
        %s782 = scalar_lea.vmem [#allocation11], %s781
        // Predicated region
        $region69: #{tpu_custom_call.1} parent=47 // pred_check
          %p783 = pneg %p196
        $region70: #{tpu_custom_call.1} parent=47 // pred_check_branch
          %785 = sbr.rel (%p783) target = $region72
        $region71: #{tpu_custom_call.1} parent=47 // pred_region
          %787 = vsyncadd %s779, 0
          %s788 = smul.addr %s26, 8
          %s789 = scalar_lea.hbm %s7, %s788
          %s791 = sshll.u32 %s782, 4
          %s792 = int_to_ptr.vmem [resolvable:$true] %s791
          %s793 = sshll.u32 %s789, 4
          %s794 = int_to_ptr.hbm [resolvable:$true] %s793
          %796 = dma.vmem_to_hbm [thread:$0]  %s792, 128, %s794, %s779
        $region72: #{tpu_custom_call.1} parent=47 // pred_fallthru
          _
      $region48: #{tpu_custom_call.1} parent=5 // pred_fallthru
        _
      %p797 = scmp.le.s32.totalorder 2, %s21
      // Predicated region
      $region73: #{tpu_custom_call.1} parent=5 // pred_check
        %p798 = pneg %p797
      $region74: #{tpu_custom_call.1} parent=5 // pred_check_branch
        %800 = sbr.rel (%p798) target = $region76
      $region75: #{tpu_custom_call.1} parent=5 // pred_region
        %s801 = ssub.s32 %s21, 2
        // Predicated region
        $region77: #{tpu_custom_call.1} parent=75 // pred_check
          %p802 = pneg %p202
        $region78: #{tpu_custom_call.1} parent=75 // pred_check_branch
          %804 = sbr.rel (%p802) target = $region80
        $region79: #{tpu_custom_call.1} parent=75 // pred_region
          %s805 = sand.u32 %s187, 1
          %s806 = scalar_lea.sflag [#allocation4], %s805
          %s807 = sand.u32 %s187, 1
          %s808 = smul.addr %s807, 8
          %s809 = scalar_lea.vmem [#allocation11], %s808
          %811 = dma.done %s806, 128
        $region80: #{tpu_custom_call.1} parent=75 // pred_fallthru
          _
      $region76: #{tpu_custom_call.1} parent=5 // pred_fallthru
        _
    $region6: #{tpu_custom_call.1} parent=1 // loop_footer
      %s25 = sadd.s32 1, %s21
    $region7: #{tpu_custom_call.1} parent=1 // loop_footer_branch
      %20 = sbr.rel target = $region3
    $region8: #{tpu_custom_call.1} parent=1 // loop_exit
      _
    %812 = vsyncpa [#allocation3], 1
    %s813 = scalar_lea.sflag [#allocation3], 1
    %814 = vsyncpa %s813, 1
    %815 = vsyncpa [#allocation6], 1
    %816 = vsyncpa [#allocation9], 1
    %817 = vsyncpa [#allocation4], 1
    %s818 = scalar_lea.sflag [#allocation4], 1
    %819 = vsyncpa %s818, 1

// kernel: tpu_custom_call.1
$region0: #{tpu_custom_call.1}
  #allocation0 [shape = 'u32[]', space=smem, size = 0x4, offset = 0x4, fixed_abs, tag = 'smem constant byte address 0x4 - core index']
  #allocation1 [shape = 'u32[72,128]{1,0:T(1,128)}', space=vmem, size = 0x9000, scoped, tag = 'internal scratch']
  %s0 = inlined_call_operand.hbm [shape: bf16[16,128], index: 0, kind: input, shape index: {}]
  %s1 = inlined_call_operand.hbm [shape: bf16[128,128], index: 1, kind: input, shape index: {}]
  %s2 = inlined_call_operand.hbm [shape: f32[1,128], index: 2, kind: input, shape index: {}]
  %s3 = inlined_call_operand.hbm [shape: bf16[3,128,128], index: 3, kind: input, shape index: {}]
  %s4 = inlined_call_operand.vmem [shape: f32[3,1,128], index: 4, kind: input, shape index: {}]
  %s5 = inlined_call_operand.hbm [shape: bf16[128,128], index: 5, kind: input, shape index: {}]
  %s6 = inlined_call_operand.vmem [shape: f32[1,128], index: 6, kind: input, shape index: {}]
  %s7 = inlined_call_operand.hbm [shape: f32[16,128], index: 7, kind: output, shape index: {}]
  %s8 = sld [smem:[#allocation0]]
  $region81: #{tpu_custom_call.1} parent=0
    _
  %s10 = ssub.s32 1, %s8
  %s11 = scalar_select 0, %s10, %s8
  $region1: #{tpu_custom_call.1} parent=0
    #allocation2 [shape = 'u8[4096]{0}', space=vmem, size = 0x1000, scoped, tag = 'input window, operand 0']
    #allocation3 [shape = 's32[2]{0}', space=sflag, size = 0x8, scoped, tag = 'scoped memory for tpu_custom_call.1']
    #allocation4 [shape = 's32[2]{0}', space=sflag, size = 0x8, scoped, tag = 'scoped memory for tpu_custom_call.1']
    #allocation5 [shape = 'u8[32768]{0}', space=vmem, size = 0x8000, scoped, tag = 'input window, operand 1, single buffered']
    #allocation6 [shape = 's32[1]{0}', space=sflag, size = 0x4, scoped, tag = 'scoped memory for tpu_custom_call.1']
    #allocation7 [shape = 'u8[512]{0}', space=vmem, size = 0x400, scoped, tag = 'input window, operand 2, single buffered']
    #allocation8 [shape = 'u8[98304]{0}', space=vmem, size = 0x18000, scoped, tag = 'input window, operand 3, single buffered']
    #allocation9 [shape = 's32[1]{0}', space=sflag, size = 0x4, scoped, tag = 'scoped memory for tpu_custom_call.1']
    #allocation10 [shape = 'u8[32768]{0}', space=vmem, size = 0x8000, scoped, tag = 'input window, operand 5, single buffered']
    #allocation11 [shape = 'u8[8192]{0}', space=vmem, size = 0x2000, scoped, tag = 'output window, operand 0']
    %12 = vsyncpa [#allocation3], 0
    %s13 = scalar_lea.sflag [#allocation3], 1
    %14 = vsyncpa %s13, 0
    %15 = vsyncpa [#allocation6], 0
    %16 = vsyncpa [#allocation9], 0
    %17 = vsyncpa [#allocation4], 0
    %s18 = scalar_lea.sflag [#allocation4], 1
    %19 = vsyncpa %s18, 0
    loop: start=0, step=1, limit=4
    $region2: #{tpu_custom_call.1} parent=1 // loop_pre_header
      _
    $region3: #{tpu_custom_call.1} parent=1 // loop_header
      %s21 = sphi 0, %s25
      %p22 = scmp.ge.s32.totalorder %s21, 4
      %s31 = sphi 0, %s33
      %s34 = sphi 0, %s31
      %s35 = sphi 0, %s34
      %s51 = sphi 0, %s35
      %s55 = sphi 0, %s55
      %s57 = sphi 0, %s55
      %s58 = sphi 0, %s57
      %s72 = sphi 0, %s58
      %s76 = sphi 0, %s76
      %s78 = sphi 0, %s76
      %s79 = sphi 0, %s78
      %s93 = sphi 0, %s79
      %s97 = sphi 0, %s97
      %s99 = sphi 0, %s97
      %s100 = sphi 0, %s99
      %s114 = sphi 0, %s100
      %s118 = sphi 0, %s118
      %s120 = sphi 0, %s118
      %s121 = sphi 0, %s120
      %s135 = sphi 0, %s121
      %s139 = sphi 0, %s139
      %s141 = sphi 0, %s139
      %s142 = sphi 0, %s141
      %s156 = sphi 0, %s142
      %s160 = sphi 0, %s160
      %s162 = sphi 0, %s160
      %s163 = sphi 0, %s162
      %s177 = sphi 0, %s163
      %s183 = sphi 0, %s185
      %s186 = sphi 0, %s183
      %s187 = sphi 0, %s186
      %s203 = sphi 0, %s187
    $region4: #{tpu_custom_call.1} parent=1 // loop_header_branch
      %24 = sbr.rel (%p22) target = $region8
    $region5: #{tpu_custom_call.1} parent=1 // loop_body
      %s26 = ssub.s32 %s21, 1
      %s27 = ssub.s32 %s21, 2
      %s28 = sadd.s32 %s21, 1
      %s29 = ssub.s32 %s21, %s28
      %p30 = scmp.eq.s32.totalorder %s29, 0
      %s32 = sadd.s32 %s31, 1
      %s33 = scalar_select %p30, %s31, %s32
      %p36 = pneg %p30
      %p37 = scmp.eq.s32.totalorder %s21, 1
      %p38 = por %p36, %p37
      %p39 = scmp.ne.s32.totalorder %s31, %s34
      %p40 = scmp.eq.s32.totalorder %s21, 0
      %p41 = por %p39, %p40
      %p42 = scmp.ne.s32.totalorder %s31, %s34
      %p43 = scmp.eq.s32.totalorder %s26, 1
      %p44 = por %p42, %p43
      %p45 = scmp.ne.s32.totalorder %s34, %s35
      %p46 = scmp.eq.s32.totalorder %s26, 0
      %p47 = por %p45, %p46
      %p48 = scmp.ne.s32.totalorder %s34, %s35
      %p49 = scmp.eq.s32.totalorder %s27, 1
      %p50 = por %p48, %p49
      %p52 = scmp.ne.s32.totalorder %s35, %s51
      %p53 = scmp.eq.s32.totalorder %s27, 0
      %p54 = por %p52, %p53
      %s56 = sadd.s32 %s55, 1
      %p59 = scmp.eq.s32.totalorder %s21, 1
      %p60 = scmp.ne.s32.totalorder %s55, %s57
      %p61 = scmp.eq.s32.totalorder %s21, 0
      %p62 = por %p60, %p61
      %p63 = scmp.ne.s32.totalorder %s55, %s57
      %p64 = scmp.eq.s32.totalorder %s26, 1
      %p65 = por %p63, %p64
      %p66 = scmp.ne.s32.totalorder %s57, %s58
      %p67 = scmp.eq.s32.totalorder %s26, 0
      %p68 = por %p66, %p67
      %p69 = scmp.ne.s32.totalorder %s57, %s58
      %p70 = scmp.eq.s32.totalorder %s27, 1
      %p71 = por %p69, %p70
      %p73 = scmp.ne.s32.totalorder %s58, %s72
      %p74 = scmp.eq.s32.totalorder %s27, 0
      %p75 = por %p73, %p74
      %s77 = sadd.s32 %s76, 1
      %p80 = scmp.eq.s32.totalorder %s21, 1
      %p81 = scmp.ne.s32.totalorder %s76, %s78
      %p82 = scmp.eq.s32.totalorder %s21, 0
      %p83 = por %p81, %p82
      %p84 = scmp.ne.s32.totalorder %s76, %s78
      %p85 = scmp.eq.s32.totalorder %s26, 1
      %p86 = por %p84, %p85
      %p87 = scmp.ne.s32.totalorder %s78, %s79
      %p88 = scmp.eq.s32.totalorder %s26, 0
      %p89 = por %p87, %p88
      %p90 = scmp.ne.s32.totalorder %s78, %s79
      %p91 = scmp.eq.s32.totalorder %s27, 1
      %p92 = por %p90, %p91
      %p94 = scmp.ne.s32.totalorder %s79, %s93
      %p95 = scmp.eq.s32.totalorder %s27, 0
      %p96 = por %p94, %p95
      %s98 = sadd.s32 %s97, 1
      %p101 = scmp.eq.s32.totalorder %s21, 1
      %p102 = scmp.ne.s32.totalorder %s97, %s99
      %p103 = scmp.eq.s32.totalorder %s21, 0
      %p104 = por %p102, %p103
      %p105 = scmp.ne.s32.totalorder %s97, %s99
      %p106 = scmp.eq.s32.totalorder %s26, 1
      %p107 = por %p105, %p106
      %p108 = scmp.ne.s32.totalorder %s99, %s100
      %p109 = scmp.eq.s32.totalorder %s26, 0
      %p110 = por %p108, %p109
      %p111 = scmp.ne.s32.totalorder %s99, %s100
      %p112 = scmp.eq.s32.totalorder %s27, 1
      %p113 = por %p111, %p112
      %p115 = scmp.ne.s32.totalorder %s100, %s114
      %p116 = scmp.eq.s32.totalorder %s27, 0
      %p117 = por %p115, %p116
      %s119 = sadd.s32 %s118, 1
      %p122 = scmp.eq.s32.totalorder %s21, 1
      %p123 = scmp.ne.s32.totalorder %s118, %s120
      %p124 = scmp.eq.s32.totalorder %s21, 0
      %p125 = por %p123, %p124
      %p126 = scmp.ne.s32.totalorder %s118, %s120
      %p127 = scmp.eq.s32.totalorder %s26, 1
      %p128 = por %p126, %p127
      %p129 = scmp.ne.s32.totalorder %s120, %s121
      %p130 = scmp.eq.s32.totalorder %s26, 0
      %p131 = por %p129, %p130
      %p132 = scmp.ne.s32.totalorder %s120, %s121
      %p133 = scmp.eq.s32.totalorder %s27, 1
      %p134 = por %p132, %p133
      %p136 = scmp.ne.s32.totalorder %s121, %s135
      %p137 = scmp.eq.s32.totalorder %s27, 0
      %p138 = por %p136, %p137
      %s140 = sadd.s32 %s139, 1
      %p143 = scmp.eq.s32.totalorder %s21, 1
      %p144 = scmp.ne.s32.totalorder %s139, %s141
      %p145 = scmp.eq.s32.totalorder %s21, 0
      %p146 = por %p144, %p145
      %p147 = scmp.ne.s32.totalorder %s139, %s141
      %p148 = scmp.eq.s32.totalorder %s26, 1
      %p149 = por %p147, %p148
      %p150 = scmp.ne.s32.totalorder %s141, %s142
      %p151 = scmp.eq.s32.totalorder %s26, 0
      %p152 = por %p150, %p151
      %p153 = scmp.ne.s32.totalorder %s141, %s142
      %p154 = scmp.eq.s32.totalorder %s27, 1
      %p155 = por %p153, %p154
      %p157 = scmp.ne.s32.totalorder %s142, %s156
      %p158 = scmp.eq.s32.totalorder %s27, 0
      %p159 = por %p157, %p158
      %s161 = sadd.s32 %s160, 1
      %p164 = scmp.eq.s32.totalorder %s21, 1
      %p165 = scmp.ne.s32.totalorder %s160, %s162
      %p166 = scmp.eq.s32.totalorder %s21, 0
      %p167 = por %p165, %p166
      %p168 = scmp.ne.s32.totalorder %s160, %s162
      %p169 = scmp.eq.s32.totalorder %s26, 1
      %p170 = por %p168, %p169
      %p171 = scmp.ne.s32.totalorder %s162, %s163
      %p172 = scmp.eq.s32.totalorder %s26, 0
      %p173 = por %p171, %p172
      %p174 = scmp.ne.s32.totalorder %s162, %s163
      %p175 = scmp.eq.s32.totalorder %s27, 1
      %p176 = por %p174, %p175
      %p178 = scmp.ne.s32.totalorder %s163, %s177
      %p179 = scmp.eq.s32.totalorder %s27, 0
      %p180 = por %p178, %p179
      %s181 = ssub.s32 %s21, %s28
      %p182 = scmp.eq.s32.totalorder %s181, 0
      %s184 = sadd.s32 %s183, 1
      %s185 = scalar_select %p182, %s183, %s184
      %p188 = pneg %p182
      %p189 = scmp.eq.s32.totalorder %s21, 1
      %p190 = por %p188, %p189
      %p191 = scmp.ne.s32.totalorder %s183, %s186
      %p192 = scmp.eq.s32.totalorder %s21, 0
      %p193 = por %p191, %p192
      %p194 = scmp.ne.s32.totalorder %s183, %s186
      %p195 = scmp.eq.s32.totalorder %s26, 1
      %p196 = por %p194, %p195
      %p197 = scmp.ne.s32.totalorder %s186, %s187
      %p198 = scmp.eq.s32.totalorder %s26, 0
      %p199 = por %p197, %p198
      %p200 = scmp.ne.s32.totalorder %s186, %s187
      %p201 = scmp.eq.s32.totalorder %s27, 1
      %p202 = por %p200, %p201
      %p204 = scmp.ne.s32.totalorder %s187, %s203
      %p205 = scmp.eq.s32.totalorder %s27, 0
      %p206 = por %p204, %p205
      %p207 = scmp.le.s32.totalorder 1, %s21
      %p208 = scmp.lt.s32.totalorder %s21, 3
      %p209 = pnand %p207, %p208
      %p210 = pneg %p209
      // Predicated region
      $region9: #{tpu_custom_call.1} parent=5 // pred_check
        _
      $region10: #{tpu_custom_call.1} parent=5 // pred_check_branch
        %212 = sbr.rel (%p209) target = $region12
      $region11: #{tpu_custom_call.1} parent=5 // pred_region
        %s213 = ssub.s32 %s21, 1
        // Predicated region
        $region13: #{tpu_custom_call.1} parent=11 // pred_check
          %p214 = pneg %p68
        $region14: #{tpu_custom_call.1} parent=11 // pred_check_branch
          %216 = sbr.rel (%p214) target = $region16
        $region15: #{tpu_custom_call.1} parent=11 // pred_region
          %218 = vsyncadd [#allocation6], 0
          %s219 = sshll.u32 %s1, 4
          %s220 = int_to_ptr.hbm [resolvable:$true] %s219
          %s221 = sshll.u32 [#allocation5], 4
          %s222 = int_to_ptr.vmem [resolvable:$true] %s221
          %227 = dma.hbm_to_vmem [thread:$0]  %s220, 1024, %s222, [#allocation6], 64, 64, 4
        $region16: #{tpu_custom_call.1} parent=11 // pred_fallthru
          _
        // Predicated region
        $region17: #{tpu_custom_call.1} parent=11 // pred_check
          %p228 = pneg %p89
        $region18: #{tpu_custom_call.1} parent=11 // pred_check_branch
          %230 = sbr.rel (%p228) target = $region20
        $region19: #{tpu_custom_call.1} parent=11 // pred_region
          %232 = vsyncadd [#allocation6], 0
          %s234 = sshll.u32 %s2, 4
          %s235 = int_to_ptr.hbm [resolvable:$true] %s234
          %s236 = sshll.u32 [#allocation7], 4
          %s237 = int_to_ptr.vmem [resolvable:$true] %s236
          %239 = dma.hbm_to_vmem [thread:$0]  %s235, 16, %s237, [#allocation6]
        $region20: #{tpu_custom_call.1} parent=11 // pred_fallthru
          _
        // Predicated region
        $region21: #{tpu_custom_call.1} parent=11 // pred_check
          %p240 = pneg %p110
        $region22: #{tpu_custom_call.1} parent=11 // pred_check_branch
          %242 = sbr.rel (%p240) target = $region24
        $region23: #{tpu_custom_call.1} parent=11 // pred_region
          %244 = vsyncadd [#allocation9], 0
          %s245 = sshll.u32 %s3, 4
          %s246 = int_to_ptr.hbm [resolvable:$true] %s245
          %s247 = sshll.u32 [#allocation8], 4
          %s248 = int_to_ptr.vmem [resolvable:$true] %s247
          %253 = dma.hbm_to_vmem [thread:$0]  %s246, 3072, %s248, [#allocation9], 64, 64, 4
        $region24: #{tpu_custom_call.1} parent=11 // pred_fallthru
          _
        // Predicated region
        $region25: #{tpu_custom_call.1} parent=11 // pred_check
          %p254 = pneg %p131
        $region26: #{tpu_custom_call.1} parent=11 // pred_check_branch
          %256 = sbr.rel (%p254) target = $region28
        $region27: #{tpu_custom_call.1} parent=11 // pred_region
          _
        $region28: #{tpu_custom_call.1} parent=11 // pred_fallthru
          _
        // Predicated region
        $region29: #{tpu_custom_call.1} parent=11 // pred_check
          %p257 = pneg %p152
        $region30: #{tpu_custom_call.1} parent=11 // pred_check_branch
          %259 = sbr.rel (%p257) target = $region32
        $region31: #{tpu_custom_call.1} parent=11 // pred_region
          %261 = vsyncadd [#allocation9], 0
          %s262 = sshll.u32 %s5, 4
          %s263 = int_to_ptr.hbm [resolvable:$true] %s262
          %s264 = sshll.u32 [#allocation10], 4
          %s265 = int_to_ptr.vmem [resolvable:$true] %s264
          %270 = dma.hbm_to_vmem [thread:$0]  %s263, 1024, %s265, [#allocation9], 64, 64, 4
        $region32: #{tpu_custom_call.1} parent=11 // pred_fallthru
          _
        // Predicated region
        $region33: #{tpu_custom_call.1} parent=11 // pred_check
          %p271 = pneg %p173
        $region34: #{tpu_custom_call.1} parent=11 // pred_check_branch
          %273 = sbr.rel (%p271) target = $region36
        $region35: #{tpu_custom_call.1} parent=11 // pred_region
          _
        $region36: #{tpu_custom_call.1} parent=11 // pred_fallthru
          _
      $region12: #{tpu_custom_call.1} parent=5 // pred_fallthru
        _
      %p274 = scmp.lt.s32.totalorder %s21, 2
      // Predicated region
      $region37: #{tpu_custom_call.1} parent=5 // pred_check
        %p275 = pneg %p274
      $region38: #{tpu_custom_call.1} parent=5 // pred_check_branch
        %277 = sbr.rel (%p275) target = $region40
      $region39: #{tpu_custom_call.1} parent=5 // pred_region
        // Predicated region
        $region41: #{tpu_custom_call.1} parent=39 // pred_check
          %p278 = pneg %p41
        $region42: #{tpu_custom_call.1} parent=39 // pred_check_branch
          %280 = sbr.rel (%p278) target = $region44
        $region43: #{tpu_custom_call.1} parent=39 // pred_region
          %s281 = sand.u32 %s31, 1
          %s282 = scalar_lea.sflag [#allocation3], %s281
          %s283 = sand.u32 %s31, 1
          %s284 = smul.addr %s283, 4
          %s285 = scalar_lea.vmem [#allocation2], %s284
          %287 = vsyncadd %s282, 0
          %s288 = smul.addr %s21, 4
          %s289 = scalar_lea.hbm %s0, %s288
          %s291 = sshll.u32 %s289, 4
          %s292 = int_to_ptr.hbm [resolvable:$true] %s291
          %s293 = sshll.u32 %s285, 4
          %s294 = int_to_ptr.vmem [resolvable:$true] %s293
          %296 = dma.hbm_to_vmem [thread:$0]  %s292, 64, %s294, %s282
        $region44: #{tpu_custom_call.1} parent=39 // pred_fallthru
          _
      $region40: #{tpu_custom_call.1} parent=5 // pred_fallthru
        _
      %p297 = scmp.le.s32.totalorder 1, %s21
      %p298 = scmp.lt.s32.totalorder %s21, 3
      %p299 = pnand %p297, %p298
      %p300 = pneg %p299
      // Predicated region
      $region45: #{tpu_custom_call.1} parent=5 // pred_check
        _
      $region46: #{tpu_custom_call.1} parent=5 // pred_check_branch
        %302 = sbr.rel (%p299) target = $region48
      $region47: #{tpu_custom_call.1} parent=5 // pred_region
        %s303 = ssub.s32 %s21, 1
        %s304 = sand.u32 %s34, 1
        %s305 = scalar_lea.sflag [#allocation3], %s304
        %s306 = sand.u32 %s34, 1
        %s307 = smul.addr %s306, 4
        %s308 = scalar_lea.vmem [#allocation2], %s307
        // Predicated region
        $region49: #{tpu_custom_call.1} parent=47 // pred_check
          %p309 = pneg %p47
        $region50: #{tpu_custom_call.1} parent=47 // pred_check_branch
          %311 = sbr.rel (%p309) target = $region52
        $region51: #{tpu_custom_call.1} parent=47 // pred_region
          %313 = dma.done %s305, 64
        $region52: #{tpu_custom_call.1} parent=47 // pred_fallthru
          _
        // Predicated region
        $region53: #{tpu_custom_call.1} parent=47 // pred_check
          %p314 = pneg %p68
        $region54: #{tpu_custom_call.1} parent=47 // pred_check_branch
          %316 = sbr.rel (%p314) target = $region56
        $region55: #{tpu_custom_call.1} parent=47 // pred_region
          %318 = dma.done [#allocation6], 1024
        $region56: #{tpu_custom_call.1} parent=47 // pred_fallthru
          _
        // Predicated region
        $region57: #{tpu_custom_call.1} parent=47 // pred_check
          %p319 = pneg %p89
        $region58: #{tpu_custom_call.1} parent=47 // pred_check_branch
          %321 = sbr.rel (%p319) target = $region60
        $region59: #{tpu_custom_call.1} parent=47 // pred_region
          %323 = dma.done [#allocation6], 16
        $region60: #{tpu_custom_call.1} parent=47 // pred_fallthru
          _
        // Predicated region
        $region61: #{tpu_custom_call.1} parent=47 // pred_check
          %p324 = pneg %p110
        $region62: #{tpu_custom_call.1} parent=47 // pred_check_branch
          %326 = sbr.rel (%p324) target = $region64
        $region63: #{tpu_custom_call.1} parent=47 // pred_region
          %328 = dma.done [#allocation9], 3072
        $region64: #{tpu_custom_call.1} parent=47 // pred_fallthru
          _
        // Predicated region
        $region65: #{tpu_custom_call.1} parent=47 // pred_check
          %p329 = pneg %p152
        $region66: #{tpu_custom_call.1} parent=47 // pred_check_branch
          %331 = sbr.rel (%p329) target = $region68
        $region67: #{tpu_custom_call.1} parent=47 // pred_region
          %333 = dma.done [#allocation9], 1024
        $region68: #{tpu_custom_call.1} parent=47 // pred_fallthru
          _
        %s334 = sand.u32 %s34, 1
        %s335 = scalar_lea.sflag [#allocation3], %s334
        %s336 = sand.u32 %s34, 1
        %s337 = smul.addr %s336, 4
        %s338 = scalar_lea.vmem [#allocation2], %s337
        %p339 = pneg %p47
        %p340 = pneg %p44
        %p341 = pneg %p68
        %p342 = pneg %p65
        %p343 = pneg %p89
        %p344 = pneg %p86
        %p345 = pneg %p110
        %p346 = pneg %p107
        %p347 = pneg %p131
        %p348 = pneg %p128
        %p349 = pneg %p152
        %p350 = pneg %p149
        %p351 = pneg %p173
        %p352 = pneg %p170
        %p353 = pneg %p199
        %p354 = pneg %p196
        %s355 = sand.u32 %s186, 1
        %s356 = scalar_lea.sflag [#allocation4], %s355
        %s357 = sand.u32 %s186, 1
        %s358 = smul.addr %s357, 8
        %s359 = scalar_lea.vmem [#allocation11], %s358
        %v360 = vld [vmem:[%s308] sm:$0xf]
        %v361 = vld [vmem:[#allocation5] sm:$0xf]
        %v362 = vld [vmem:[#allocation5 + $0x4] sm:$0xf]
        %v363 = vld [vmem:[#allocation5 + $0x8] sm:$0xf]
        %v364 = vld [vmem:[#allocation5 + $0xc] sm:$0xf]
        %v365 = vld [vmem:[#allocation5 + $0x10] sm:$0xf]
        %v366 = vld [vmem:[#allocation5 + $0x14] sm:$0xf]
        %v367 = vld [vmem:[#allocation5 + $0x18] sm:$0xf]
        %v368 = vld [vmem:[#allocation5 + $0x1c] sm:$0xf]
        %v369 = vld [vmem:[#allocation5 + $0x20] sm:$0xf]
        %v370 = vld [vmem:[#allocation5 + $0x24] sm:$0xf]
        %v371 = vld [vmem:[#allocation5 + $0x28] sm:$0xf]
        %v372 = vld [vmem:[#allocation5 + $0x2c] sm:$0xf]
        %v373 = vld [vmem:[#allocation5 + $0x30] sm:$0xf]
        %v374 = vld [vmem:[#allocation5 + $0x34] sm:$0xf]
        %v375 = vld [vmem:[#allocation5 + $0x38] sm:$0xf]
        %v376 = vld [vmem:[#allocation5 + $0x3c] sm:$0xf]
        %v377 = vld [vmem:[#allocation7] sm:$0x1]
        %v379 = vperm.slane %v377, 0
        %v397 = vunpack.c.l.b16 %v361
        %v398 = vunpack.c.l.b16 %v362
        %v399 = vunpack.c.l.b16 %v363
        %v400 = vunpack.c.l.b16 %v364
        %v401 = vunpack.c.l.b16 %v365
        %v402 = vunpack.c.l.b16 %v366
        %v403 = vunpack.c.l.b16 %v367
        %v404 = vunpack.c.l.b16 %v368
        %v405 = vunpack.c.l.b16 %v369
        %v406 = vunpack.c.l.b16 %v370
        %v407 = vunpack.c.l.b16 %v371
        %v408 = vunpack.c.l.b16 %v372
        %v409 = vunpack.c.l.b16 %v373
        %v410 = vunpack.c.l.b16 %v374
        %v411 = vunpack.c.l.b16 %v375
        %v412 = vunpack.c.l.b16 %v376
        %v413 = vpack.c.b16 %v398, %v397
        %v414 = vpack.c.b16 %v400, %v399
        %v415 = vpack.c.b16 %v402, %v401
        %v416 = vpack.c.b16 %v404, %v403
        %v417 = vpack.c.b16 %v406, %v405
        %v418 = vpack.c.b16 %v408, %v407
        %v419 = vpack.c.b16 %v410, %v409
        %v420 = vpack.c.b16 %v412, %v411
        %429 = vmatpush.bf16.msra.mxu0 %v420
        %430 = vmatpush.bf16.msra.mxu0 %v419
        %431 = vmatpush.bf16.msra.mxu0 %v418
        %432 = vmatpush.bf16.msra.mxu0 %v417
        %433 = vmatpush.bf16.msra.mxu0 %v416
        %434 = vmatpush.bf16.msra.mxu0 %v415
        %435 = vmatpush.bf16.msra.mxu0 %v414
        %436 = vmatpush.bf16.msra.mxu0 %v413
        %437 = vmatmul.bf16.gmra.mxu0 %v360
        %v438 = vpop.f32.mrf.mxu0
        %v439 = vadd.f32 %v379, %v438
        %v440 = vpop.f32.mrf.mxu0
        %441 = vdwg.mxu0
        %v442 = vpack.c.bf16 %v439, %v439
        %v443 = vld [vmem:[#allocation8] sm:$0xf]
        %v444 = vld [vmem:[#allocation8 + $0x4] sm:$0xf]
        %v445 = vld [vmem:[#allocation8 + $0x8] sm:$0xf]
        %v446 = vld [vmem:[#allocation8 + $0xc] sm:$0xf]
        %v447 = vld [vmem:[#allocation8 + $0x10] sm:$0xf]
        %v448 = vld [vmem:[#allocation8 + $0x14] sm:$0xf]
        %v449 = vld [vmem:[#allocation8 + $0x18] sm:$0xf]
        %v450 = vld [vmem:[#allocation8 + $0x1c] sm:$0xf]
        %v451 = vld [vmem:[#allocation8 + $0x20] sm:$0xf]
        %v452 = vld [vmem:[#allocation8 + $0x24] sm:$0xf]
        %v453 = vld [vmem:[#allocation8 + $0x28] sm:$0xf]
        %v454 = vld [vmem:[#allocation8 + $0x2c] sm:$0xf]
        %v455 = vld [vmem:[#allocation8 + $0x30] sm:$0xf]
        %v456 = vld [vmem:[#allocation8 + $0x34] sm:$0xf]
        %v457 = vld [vmem:[#allocation8 + $0x38] sm:$0xf]
        %v458 = vld [vmem:[#allocation8 + $0x3c] sm:$0xf]
        %v459 = vld [vmem:[%s4] sm:$0x1]
        %v461 = vperm.slane %v459, 0
        %v479 = vunpack.c.l.b16 %v443
        %v480 = vunpack.c.l.b16 %v444
        %v481 = vunpack.c.l.b16 %v445
        %v482 = vunpack.c.l.b16 %v446
        %v483 = vunpack.c.l.b16 %v447
        %v484 = vunpack.c.l.b16 %v448
        %v485 = vunpack.c.l.b16 %v449
        %v486 = vunpack.c.l.b16 %v450
        %v487 = vunpack.c.l.b16 %v451
        %v488 = vunpack.c.l.b16 %v452
        %v489 = vunpack.c.l.b16 %v453
        %v490 = vunpack.c.l.b16 %v454
        %v491 = vunpack.c.l.b16 %v455
        %v492 = vunpack.c.l.b16 %v456
        %v493 = vunpack.c.l.b16 %v457
        %v494 = vunpack.c.l.b16 %v458
        %v495 = vpack.c.b16 %v480, %v479
        %v496 = vpack.c.b16 %v482, %v481
        %v497 = vpack.c.b16 %v484, %v483
        %v498 = vpack.c.b16 %v486, %v485
        %v499 = vpack.c.b16 %v488, %v487
        %v500 = vpack.c.b16 %v490, %v489
        %v501 = vpack.c.b16 %v492, %v491
        %v502 = vpack.c.b16 %v494, %v493
        %511 = vmatpush.bf16.msra.mxu0 %v502
        %512 = vmatpush.bf16.msra.mxu0 %v501
        %513 = vmatpush.bf16.msra.mxu0 %v500
        %514 = vmatpush.bf16.msra.mxu0 %v499
        %515 = vmatpush.bf16.msra.mxu0 %v498
        %516 = vmatpush.bf16.msra.mxu0 %v497
        %517 = vmatpush.bf16.msra.mxu0 %v496
        %518 = vmatpush.bf16.msra.mxu0 %v495
        %519 = vmatmul.bf16.gmra.mxu0 %v442
        %v520 = vpop.f32.mrf.mxu0
        %v521 = vadd.f32 %v461, %v520
        %v522 = vpop.f32.mrf.mxu0
        %523 = vdwg.mxu0
        %v524 = vmax.f32 %v521, 0.0
        %v525 = vpack.c.bf16 %v524, %v524
        %s526 = scalar_lea.vmem [#allocation8], 64
        %v527 = vld [vmem:[%s526] sm:$0xf]
        %v528 = vld [vmem:[%s526 + $0x4] sm:$0xf]
        %v529 = vld [vmem:[%s526 + $0x8] sm:$0xf]
        %v530 = vld [vmem:[%s526 + $0xc] sm:$0xf]
        %v531 = vld [vmem:[%s526 + $0x10] sm:$0xf]
        %v532 = vld [vmem:[%s526 + $0x14] sm:$0xf]
        %v533 = vld [vmem:[%s526 + $0x18] sm:$0xf]
        %v534 = vld [vmem:[%s526 + $0x1c] sm:$0xf]
        %v535 = vld [vmem:[%s526 + $0x20] sm:$0xf]
        %v536 = vld [vmem:[%s526 + $0x24] sm:$0xf]
        %v537 = vld [vmem:[%s526 + $0x28] sm:$0xf]
        %v538 = vld [vmem:[%s526 + $0x2c] sm:$0xf]
        %v539 = vld [vmem:[%s526 + $0x30] sm:$0xf]
        %v540 = vld [vmem:[%s526 + $0x34] sm:$0xf]
        %v541 = vld [vmem:[%s526 + $0x38] sm:$0xf]
        %v542 = vld [vmem:[%s526 + $0x3c] sm:$0xf]
        %s543 = scalar_lea.vmem %s4, 1
        %v544 = vld [vmem:[%s543] sm:$0x1]
        %v546 = vperm.slane %v544, 0
        %v564 = vunpack.c.l.b16 %v527
        %v565 = vunpack.c.l.b16 %v528
        %v566 = vunpack.c.l.b16 %v529
        %v567 = vunpack.c.l.b16 %v530
        %v568 = vunpack.c.l.b16 %v531
        %v569 = vunpack.c.l.b16 %v532
        %v570 = vunpack.c.l.b16 %v533
        %v571 = vunpack.c.l.b16 %v534
        %v572 = vunpack.c.l.b16 %v535
        %v573 = vunpack.c.l.b16 %v536
        %v574 = vunpack.c.l.b16 %v537
        %v575 = vunpack.c.l.b16 %v538
        %v576 = vunpack.c.l.b16 %v539
        %v577 = vunpack.c.l.b16 %v540
        %v578 = vunpack.c.l.b16 %v541
        %v579 = vunpack.c.l.b16 %v542
        %v580 = vpack.c.b16 %v565, %v564
        %v581 = vpack.c.b16 %v567, %v566
        %v582 = vpack.c.b16 %v569, %v568
        %v583 = vpack.c.b16 %v571, %v570
        %v584 = vpack.c.b16 %v573, %v572
        %v585 = vpack.c.b16 %v575, %v574
        %v586 = vpack.c.b16 %v577, %v576
        %v587 = vpack.c.b16 %v579, %v578
        %596 = vmatpush.bf16.msra.mxu0 %v587
        %597 = vmatpush.bf16.msra.mxu0 %v586
        %598 = vmatpush.bf16.msra.mxu0 %v585
        %599 = vmatpush.bf16.msra.mxu0 %v584
        %600 = vmatpush.bf16.msra.mxu0 %v583
        %601 = vmatpush.bf16.msra.mxu0 %v582
        %602 = vmatpush.bf16.msra.mxu0 %v581
        %603 = vmatpush.bf16.msra.mxu0 %v580
        %604 = vmatmul.bf16.gmra.mxu0 %v525
        %v605 = vpop.f32.mrf.mxu0
        %v606 = vadd.f32 %v546, %v605
        %v607 = vpop.f32.mrf.mxu0
        %608 = vdwg.mxu0
        %v609 = vmax.f32 %v606, 0.0
        %v610 = vpack.c.bf16 %v609, %v609
        %s611 = scalar_lea.vmem [#allocation8], 128
        %v612 = vld [vmem:[%s611] sm:$0xf]
        %v613 = vld [vmem:[%s611 + $0x4] sm:$0xf]
        %v614 = vld [vmem:[%s611 + $0x8] sm:$0xf]
        %v615 = vld [vmem:[%s611 + $0xc] sm:$0xf]
        %v616 = vld [vmem:[%s611 + $0x10] sm:$0xf]
        %v617 = vld [vmem:[%s611 + $0x14] sm:$0xf]
        %v618 = vld [vmem:[%s611 + $0x18] sm:$0xf]
        %v619 = vld [vmem:[%s611 + $0x1c] sm:$0xf]
        %v620 = vld [vmem:[%s611 + $0x20] sm:$0xf]
        %v621 = vld [vmem:[%s611 + $0x24] sm:$0xf]
        %v622 = vld [vmem:[%s611 + $0x28] sm:$0xf]
        %v623 = vld [vmem:[%s611 + $0x2c] sm:$0xf]
        %v624 = vld [vmem:[%s611 + $0x30] sm:$0xf]
        %v625 = vld [vmem:[%s611 + $0x34] sm:$0xf]
        %v626 = vld [vmem:[%s611 + $0x38] sm:$0xf]
        %v627 = vld [vmem:[%s611 + $0x3c] sm:$0xf]
        %s628 = scalar_lea.vmem %s4, 2
        %v629 = vld [vmem:[%s628] sm:$0x1]
        %v631 = vperm.slane %v629, 0
        %v649 = vunpack.c.l.b16 %v612
        %v650 = vunpack.c.l.b16 %v613
        %v651 = vunpack.c.l.b16 %v614
        %v652 = vunpack.c.l.b16 %v615
        %v653 = vunpack.c.l.b16 %v616
        %v654 = vunpack.c.l.b16 %v617
        %v655 = vunpack.c.l.b16 %v618
        %v656 = vunpack.c.l.b16 %v619
        %v657 = vunpack.c.l.b16 %v620
        %v658 = vunpack.c.l.b16 %v621
        %v659 = vunpack.c.l.b16 %v622
        %v660 = vunpack.c.l.b16 %v623
        %v661 = vunpack.c.l.b16 %v624
        %v662 = vunpack.c.l.b16 %v625
        %v663 = vunpack.c.l.b16 %v626
        %v664 = vunpack.c.l.b16 %v627
        %v665 = vpack.c.b16 %v650, %v649
        %v666 = vpack.c.b16 %v652, %v651
        %v667 = vpack.c.b16 %v654, %v653
        %v668 = vpack.c.b16 %v656, %v655
        %v669 = vpack.c.b16 %v658, %v657
        %v670 = vpack.c.b16 %v660, %v659
        %v671 = vpack.c.b16 %v662, %v661
        %v672 = vpack.c.b16 %v664, %v663
        %681 = vmatpush.bf16.msra.mxu0 %v672
        %682 = vmatpush.bf16.msra.mxu0 %v671
        %683 = vmatpush.bf16.msra.mxu0 %v670
        %684 = vmatpush.bf16.msra.mxu0 %v669
        %685 = vmatpush.bf16.msra.mxu0 %v668
        %686 = vmatpush.bf16.msra.mxu0 %v667
        %687 = vmatpush.bf16.msra.mxu0 %v666
        %688 = vmatpush.bf16.msra.mxu0 %v665
        %689 = vmatmul.bf16.gmra.mxu0 %v610
        %v690 = vpop.f32.mrf.mxu0
        %v691 = vadd.f32 %v631, %v690
        %v692 = vpop.f32.mrf.mxu0
        %693 = vdwg.mxu0
        %v694 = vmax.f32 %v691, 0.0
        %v695 = vpack.c.bf16 %v694, %v694
        %v696 = vld [vmem:[#allocation10] sm:$0xf]
        %v697 = vld [vmem:[#allocation10 + $0x4] sm:$0xf]
        %v698 = vld [vmem:[#allocation10 + $0x8] sm:$0xf]
        %v699 = vld [vmem:[#allocation10 + $0xc] sm:$0xf]
        %v700 = vld [vmem:[#allocation10 + $0x10] sm:$0xf]
        %v701 = vld [vmem:[#allocation10 + $0x14] sm:$0xf]
        %v702 = vld [vmem:[#allocation10 + $0x18] sm:$0xf]
        %v703 = vld [vmem:[#allocation10 + $0x1c] sm:$0xf]
        %v704 = vld [vmem:[#allocation10 + $0x20] sm:$0xf]
        %v705 = vld [vmem:[#allocation10 + $0x24] sm:$0xf]
        %v706 = vld [vmem:[#allocation10 + $0x28] sm:$0xf]
        %v707 = vld [vmem:[#allocation10 + $0x2c] sm:$0xf]
        %v708 = vld [vmem:[#allocation10 + $0x30] sm:$0xf]
        %v709 = vld [vmem:[#allocation10 + $0x34] sm:$0xf]
        %v710 = vld [vmem:[#allocation10 + $0x38] sm:$0xf]
        %v711 = vld [vmem:[#allocation10 + $0x3c] sm:$0xf]
        %v712 = vld [vmem:[%s6] sm:$0x1]
        %v714 = vperm.slane %v712, 0
        %v732 = vunpack.c.l.b16 %v696
        %v733 = vunpack.c.l.b16 %v697
        %v734 = vunpack.c.l.b16 %v698
        %v735 = vunpack.c.l.b16 %v699
        %v736 = vunpack.c.l.b16 %v700
        %v737 = vunpack.c.l.b16 %v701
        %v738 = vunpack.c.l.b16 %v702
        %v739 = vunpack.c.l.b16 %v703
        %v740 = vunpack.c.l.b16 %v704
        %v741 = vunpack.c.l.b16 %v705
        %v742 = vunpack.c.l.b16 %v706
        %v743 = vunpack.c.l.b16 %v707
        %v744 = vunpack.c.l.b16 %v708
        %v745 = vunpack.c.l.b16 %v709
        %v746 = vunpack.c.l.b16 %v710
        %v747 = vunpack.c.l.b16 %v711
        %v748 = vpack.c.b16 %v733, %v732
        %v749 = vpack.c.b16 %v735, %v734
        %v750 = vpack.c.b16 %v737, %v736
        %v751 = vpack.c.b16 %v739, %v738
        %v752 = vpack.c.b16 %v741, %v740
        %v753 = vpack.c.b16 %v743, %v742
        %v754 = vpack.c.b16 %v745, %v744
        %v755 = vpack.c.b16 %v747, %v746
        %764 = vmatpush.bf16.msra.mxu0 %v755
        %765 = vmatpush.bf16.msra.mxu0 %v754
        %766 = vmatpush.bf16.msra.mxu0 %v753
        %767 = vmatpush.bf16.msra.mxu0 %v752
        %768 = vmatpush.bf16.msra.mxu0 %v751
        %769 = vmatpush.bf16.msra.mxu0 %v750
        %770 = vmatpush.bf16.msra.mxu0 %v749
        %771 = vmatpush.bf16.msra.mxu0 %v748
        %772 = vmatmul.bf16.gmra.mxu0 %v695
        %v773 = vpop.f32.mrf.mxu0
        %v774 = vadd.f32 %v714, %v773
        %v775 = vpop.f32.mrf.mxu0
        %776 = vdwg.mxu0
        %777 = vst [vmem:[%s359] sm:$0xff] %v774
        %s778 = sand.u32 %s186, 1
        %s779 = scalar_lea.sflag [#allocation4], %s778
        %s780 = sand.u32 %s186, 1
        %s781 = smul.addr %s780, 8
        %s782 = scalar_lea.vmem [#allocation11], %s781
        // Predicated region
        $region69: #{tpu_custom_call.1} parent=47 // pred_check
          %p783 = pneg %p196
        $region70: #{tpu_custom_call.1} parent=47 // pred_check_branch
          %785 = sbr.rel (%p783) target = $region72
        $region71: #{tpu_custom_call.1} parent=47 // pred_region
          %787 = vsyncadd %s779, 0
          %s788 = smul.addr %s26, 8
          %s789 = scalar_lea.hbm %s7, %s788
          %s791 = sshll.u32 %s782, 4
          %s792 = int_to_ptr.vmem [resolvable:$true] %s791
          %s793 = sshll.u32 %s789, 4
          %s794 = int_to_ptr.hbm [resolvable:$true] %s793
          %796 = dma.vmem_to_hbm [thread:$0]  %s792, 128, %s794, %s779
        $region72: #{tpu_custom_call.1} parent=47 // pred_fallthru
          _
      $region48: #{tpu_custom_call.1} parent=5 // pred_fallthru
        _
      %p797 = scmp.le.s32.totalorder 2, %s21
      // Predicated region
      $region73: #{tpu_custom_call.1} parent=5 // pred_check
        %p798 = pneg %p797
      $region74: #{tpu_custom_call.1} parent=5 // pred_check_branch
        %800 = sbr.rel (%p798) target = $region76
      $region75: #{tpu_custom_call.1} parent=5 // pred_region
        %s801 = ssub.s32 %s21, 2
        // Predicated region
        $region77: #{tpu_custom_call.1} parent=75 // pred_check
          %p802 = pneg %p202
        $region78: #{tpu_custom_call.1} parent=75 // pred_check_branch
          %804 = sbr.rel (%p802) target = $region80
        $region79: #{tpu_custom_call.1} parent=75 // pred_region
          %s805 = sand.u32 %s187, 1
          %s806 = scalar_lea.sflag [#allocation4], %s805
          %s807 = sand.u32 %s187, 1
          %s808 = smul.addr %s807, 8
          %s809 = scalar_lea.vmem [#allocation11], %s808
          %811 = dma.done %s806, 128
        $region80: #{tpu_custom_call.1} parent=75 // pred_fallthru
          _
      $region76: #{tpu_custom_call.1} parent=5 // pred_fallthru
        _
    $region6: #{tpu_custom_call.1} parent=1 // loop_footer
      %s25 = sadd.s32 1, %s21
    $region7: #{tpu_custom_call.1} parent=1 // loop_footer_branch
      %20 = sbr.rel target = $region3
    $region8: #{tpu_custom_call.1} parent=1 // loop_exit
      _
    %812 = vsyncpa [#allocation3], 1
    %s813 = scalar_lea.sflag [#allocation3], 1
    %814 = vsyncpa %s813, 1
    %815 = vsyncpa [#allocation6], 1
    %816 = vsyncpa [#allocation9], 1
    %817 = vsyncpa [#allocation4], 1
    %s818 = scalar_lea.sflag [#allocation4], 1
    %819 = vsyncpa %s818, 1

</llo_original>
